<compile_context>
chip_gen: v7x
topology: tpu7x:2x2x1
jax: 0.10.0
libtpu: 0.0.40
codegen_flags: <defaults>
</compile_context>

<pallas_src>
import math

import jax
import jax.numpy as jnp
from jax import lax
from jax.experimental import pallas as pl
from jax.experimental.pallas import tpu as pltpu

LN_EPS = 1e-5  # torch.nn.LayerNorm default


def _layer_norm(x, gamma, beta):
    mean = jnp.mean(x, axis=-1, keepdims=True)
    var = jnp.mean((x - mean) ** 2, axis=-1, keepdims=True)
    return (x - mean) * lax.rsqrt(var + LN_EPS) * gamma + beta


# --------------------------------------------------------------------------
# Fused kernel: one batch element per grid step.
#   LN1 -> Q/K/V proj -> RoPE -> per-head softmax attention -> O proj
#   -> residual -> LN2.   Also writes attention scores (B,H,L,L).
# --------------------------------------------------------------------------
def fused_rope_attn_kernel(x_ref, g1_ref, b1_ref,
                           wq_ref, bq_ref, wk_ref, bk_ref, wv_ref, bv_ref,
                           cos_ref, sin_ref,
                           wo_ref, bo_ref, g2_ref, b2_ref,
                           out_ref, s_ref):
    L, HD = cos_ref.shape
    H = s_ref.shape[1]
    D = HD // H
    scale = 1.0 / math.sqrt(D)

    # ---- LayerNorm 1 (f32 statistics) ----
    x = x_ref[0]                                           # (L, Din) f32
    xn = _layer_norm(x, g1_ref[...], b1_ref[...])
    xn_b = xn.astype(jnp.bfloat16)

    # ---- Q/K/V projections (bf16 operands, f32 accumulation) ----
    q = jnp.dot(xn_b, wq_ref[...], preferred_element_type=jnp.float32) + bq_ref[...]
    k = jnp.dot(xn_b, wk_ref[...], preferred_element_type=jnp.float32) + bk_ref[...]
    v = jnp.dot(xn_b, wv_ref[...], preferred_element_type=jnp.float32) + bv_ref[...]

    # ---- RoPE in lane-dense (L, H*D) layout ----
    # sin_ref already carries the alternating sign (-sin on even lanes, +sin on
    # odd lanes), so only a pure pairwise lane swap is needed:
    #   swap[:, 2i] = t[:, 2i+1],  swap[:, 2i+1] = t[:, 2i]
    cos = cos_ref[...]
    sin_alt = sin_ref[...]
    even = (lax.broadcasted_iota(jnp.int32, (L, HD), 1) % 2) == 0

    def rope(t):
        swap = jnp.where(even,
                         pltpu.roll(t, HD - 1, axis=1),    # even lane j <- t[:, j+1]
                         pltpu.roll(t, 1, axis=1))         # odd  lane j <- t[:, j-1]
        return t * cos + swap * sin_alt

    qr = (rope(q) * scale).astype(jnp.bfloat16)            # fold 1/sqrt(D) into q
    kr = rope(k).astype(jnp.bfloat16)
    vb = v.astype(jnp.bfloat16)

    # ---- Per-head attention (unrolled loop over heads, static lane slices) ----
    attn_heads = []
    for h in range(H):
        sl = slice(h * D, (h + 1) * D)
        logits = lax.dot_general(qr[:, sl], kr[:, sl],
                                 (((1,), (1,)), ((), ())),
                                 preferred_element_type=jnp.float32)   # (L, L)
        m = jnp.max(logits, axis=-1, keepdims=True)
        e = jnp.exp(logits - m)
        p = e * pl.reciprocal(jnp.sum(e, axis=-1, keepdims=True), approx=True)
        s_ref[0, h] = p                                     # attention scores (f32)
        attn_heads.append(jnp.dot(p.astype(jnp.bfloat16), vb[:, sl],
                                  preferred_element_type=jnp.float32))
    a = jnp.concatenate(attn_heads, axis=-1).astype(jnp.bfloat16)      # (L, H*D)

    # ---- Output projection + residual + LayerNorm 2 ----
    proj = jnp.dot(a, wo_ref[...], preferred_element_type=jnp.float32) + bo_ref[...]
    y = x + proj                                            # dropout = identity
    out_ref[0] = _layer_norm(y, g2_ref[...], b2_ref[...])


# --------------------------------------------------------------------------
# Host-side helpers (parameter-like constants)
# --------------------------------------------------------------------------
def sinusoidal_cos_sin(max_len, head_dim):
    # Matches torch sinusoidal_position_embedding + repeat_interleave(2, -1)
    position = jnp.arange(max_len, dtype=jnp.float32)[:, None]          # (L, 1)
    ids = jnp.arange(head_dim // 2, dtype=jnp.float32)                  # (D/2,)
    theta = jnp.power(10000.0, -2.0 * ids / head_dim)                   # (D/2,)
    emb = position * theta                                              # (L, D/2)
    cos_pos = jnp.repeat(jnp.cos(emb), 2, axis=-1)                      # (L, D)
    sin_pos = jnp.repeat(jnp.sin(emb), 2, axis=-1)                      # (L, D)
    return cos_pos, sin_pos


# --------------------------------------------------------------------------
# Forward pass wrapper
# --------------------------------------------------------------------------
def rope_attention_forward(x, params):
    B, L, Din = x.shape
    H, D = params["nums_head"], params["head_dim"]
    HD = H * D

    cos_d, sin_d = sinusoidal_cos_sin(L, D)                             # (L, D)
    sign = jnp.where(jnp.arange(D) % 2 == 0, -1.0, 1.0).astype(jnp.float32)
    cos_hd = jnp.tile(cos_d, (1, H))                                    # (L, HD)
    sin_alt_hd = jnp.tile(sin_d * sign, (1, H))                         # (L, HD), sign folded

    bf = jnp.bfloat16
    wq = params["wq"].astype(bf)
    wk = params["wk"].astype(bf)
    wv = params["wv"].astype(bf)
    wo = params["wo"].astype(bf)

    def full(shape):
        return pl.BlockSpec(shape, lambda b, _n=len(shape): (0,) * _n)

    out, scores = pl.pallas_call(
        fused_rope_attn_kernel,
        out_shape=(jax.ShapeDtypeStruct((B, L, Din), jnp.float32),
                   jax.ShapeDtypeStruct((B, H, L, L), jnp.float32)),
        grid=(B,),
        in_specs=[
            pl.BlockSpec((1, L, Din), lambda b: (b, 0, 0)),             # x
            full((1, Din)), full((1, Din)),                             # gamma1, beta1
            full((Din, HD)), full((1, HD)),                             # Wq, bq
            full((Din, HD)), full((1, HD)),                             # Wk, bk
            full((Din, HD)), full((1, HD)),                             # Wv, bv
            full((L, HD)), full((L, HD)),                               # cos, signed sin
            full((HD, Din)), full((1, Din)),                            # Wo, bo
            full((1, Din)), full((1, Din)),                             # gamma2, beta2
        ],
        out_specs=(pl.BlockSpec((1, L, Din), lambda b: (b, 0, 0)),
                   pl.BlockSpec((1, H, L, L), lambda b: (b, 0, 0, 0))),
        compiler_params=pltpu.CompilerParams(
            dimension_semantics=("parallel",)),
    )(x, params["g1"], params["b1"],
      wq, params["bq"], wk, params["bk"], wv, params["bv"],
      cos_hd, sin_alt_hd,
      wo, params["bo"], params["g2"], params["b2"])

    return out, scores


# --------------------------------------------------------------------------
# Pure-JAX f32 reference (for correctness check)
# --------------------------------------------------------------------------
def reference_forward(x, p):
    B, L, Din = x.shape
    H, D = p["nums_head"], p["head_dim"]
    cos_pos, sin_pos = sinusoidal_cos_sin(L, D)

    def ln(t, g, b):
        m = t.mean(-1, keepdims=True)
        v = ((t - m) ** 2).mean(-1, keepdims=True)
        return (t - m) / jnp.sqrt(v + LN_EPS) * g + b

    xn = ln(x, p["g1"][0], p["b1"][0])

    def proj(w, b):
        y = xn @ w + b[0]
        return y.reshape(B, L, H, D).transpose(0, 2, 1, 3)

    q, k, v = proj(p["wq"], p["bq"]), proj(p["wk"], p["bk"]), proj(p["wv"], p["bv"])

    def rope(t):
        t2 = jnp.stack([-t[..., 1::2], t[..., ::2]], axis=-1).reshape(t.shape)
        return t * cos_pos + t2 * sin_pos

    qr, kr = rope(q), rope(k)
    logits = jnp.einsum("bhqd,bhkd->bhqk", qr, kr) / math.sqrt(D)
    sc = jax.nn.softmax(logits, axis=-1)
    o = jnp.einsum("bhqk,bhkd->bhqd", sc, v)
    o = o.transpose(0, 2, 1, 3).reshape(B, L, H * D)
    out = x + (o @ p["wo"] + p["bo"][0])
    return ln(out, p["g2"][0], p["b2"][0]), sc


# --------------------------------------------------------------------------
def init_params(key, input_dim, head_dim, nums_head):
    HD = nums_head * head_dim
    ks = jax.random.split(key, 8)
    s_in = 1.0 / math.sqrt(input_dim)
    s_hd = 1.0 / math.sqrt(HD)
    u = jax.random.uniform
    return {
        "nums_head": nums_head,
        "head_dim": head_dim,
        "wq": u(ks[0], (input_dim, HD), jnp.float32, -s_in, s_in),
        "bq": u(ks[1], (1, HD), jnp.float32, -s_in, s_in),
        "wk": u(ks[2], (input_dim, HD), jnp.float32, -s_in, s_in),
        "bk": u(ks[3], (1, HD), jnp.float32, -s_in, s_in),
        "wv": u(ks[4], (input_dim, HD), jnp.float32, -s_in, s_in),
        "bv": u(ks[5], (1, HD), jnp.float32, -s_in, s_in),
        "wo": u(ks[6], (HD, input_dim), jnp.float32, -s_hd, s_hd),
        "bo": u(ks[7], (1, input_dim), jnp.float32, -s_hd, s_hd),
        "g1": jnp.ones((1, input_dim), jnp.float32),
        "b1": jnp.zeros((1, input_dim), jnp.float32),
        "g2": jnp.ones((1, input_dim), jnp.float32),
        "b2": jnp.zeros((1, input_dim), jnp.float32),
    }


if __name__ == "__main__":
    # small config (lane-dense): input_dim=128, head_dim=32, nums_head=4, max_len=8, batch=2
    B, L, Din, H, D = 2, 8, 128, 4, 32

    key = jax.random.PRNGKey(0)
    k_param, k_x = jax.random.split(key)
    params = init_params(k_param, Din, D, H)
    x = jax.random.normal(k_x, (B, L, Din), jnp.float32)

    out, scores = rope_attention_forward(x, params)
    (out, scores) = jax.block_until_ready((out, scores))

    ref_out, ref_scores = reference_forward(x, params)
    assert out.shape == (B, L, Din) and scores.shape == (B, H, L, L)
    # bf16 matmul operands (f32 accumulation) -> loosened tolerance vs f32 reference.
    assert jnp.allclose(out, ref_out, atol=2e-2, rtol=2e-2), "output mismatch"
    assert jnp.allclose(scores, ref_scores, atol=2e-2, rtol=2e-2), "scores mismatch"

    print("KERNEL_OK")
</pallas_src>

<mosaic_0001>
module attributes {stable_mosaic.version = 11 : i64} {
  func.func @fused_rope_attn_kernel(%arg0: i32, %arg1: memref<1x8x128xf32, #tpu.memory_space<vmem>>, %arg2: memref<1x128xf32, #tpu.memory_space<vmem>>, %arg3: memref<1x128xf32, #tpu.memory_space<vmem>>, %arg4: memref<128x128xbf16, #tpu.memory_space<vmem>>, %arg5: memref<1x128xf32, #tpu.memory_space<vmem>>, %arg6: memref<128x128xbf16, #tpu.memory_space<vmem>>, %arg7: memref<1x128xf32, #tpu.memory_space<vmem>>, %arg8: memref<128x128xbf16, #tpu.memory_space<vmem>>, %arg9: memref<1x128xf32, #tpu.memory_space<vmem>>, %arg10: memref<8x128xf32, #tpu.memory_space<vmem>>, %arg11: memref<8x128xf32, #tpu.memory_space<vmem>>, %arg12: memref<128x128xbf16, #tpu.memory_space<vmem>>, %arg13: memref<1x128xf32, #tpu.memory_space<vmem>>, %arg14: memref<1x128xf32, #tpu.memory_space<vmem>>, %arg15: memref<1x128xf32, #tpu.memory_space<vmem>>, %arg16: memref<1x8x128xf32, #tpu.memory_space<vmem>>, %arg17: memref<1x4x8x8xf32, #tpu.memory_space<vmem>>) attributes {dimension_semantics = [#tpu.dimension_semantics<parallel>], iteration_bounds = array<i64: 2>, scalar_prefetch = 0 : i64, scratch_operands = 0 : i64, tpu.core_type = #tpu.core_type<tc>, window_params = [{transform_indices = @transform_0, window_bounds = array<i64: 1, 8, 128>}, {pipeline_mode = #tpu.pipeline_mode<synchronous>, transform_indices = @transform_1, window_bounds = array<i64: 1, 128>}, {pipeline_mode = #tpu.pipeline_mode<synchronous>, transform_indices = @transform_2, window_bounds = array<i64: 1, 128>}, {pipeline_mode = #tpu.pipeline_mode<synchronous>, transform_indices = @transform_3, window_bounds = array<i64: 128, 128>}, {pipeline_mode = #tpu.pipeline_mode<synchronous>, transform_indices = @transform_4, window_bounds = array<i64: 1, 128>}, {pipeline_mode = #tpu.pipeline_mode<synchronous>, transform_indices = @transform_5, window_bounds = array<i64: 128, 128>}, {pipeline_mode = #tpu.pipeline_mode<synchronous>, transform_indices = @transform_6, window_bounds = array<i64: 1, 128>}, {pipeline_mode = #tpu.pipeline_mode<synchronous>, transform_indices = @transform_7, window_bounds = array<i64: 128, 128>}, {pipeline_mode = #tpu.pipeline_mode<synchronous>, transform_indices = @transform_8, window_bounds = array<i64: 1, 128>}, {pipeline_mode = #tpu.pipeline_mode<synchronous>, transform_indices = @transform_9, window_bounds = array<i64: 8, 128>}, {pipeline_mode = #tpu.pipeline_mode<synchronous>, transform_indices = @transform_10, window_bounds = array<i64: 8, 128>}, {pipeline_mode = #tpu.pipeline_mode<synchronous>, transform_indices = @transform_11, window_bounds = array<i64: 128, 128>}, {pipeline_mode = #tpu.pipeline_mode<synchronous>, transform_indices = @transform_12, window_bounds = array<i64: 1, 128>}, {pipeline_mode = #tpu.pipeline_mode<synchronous>, transform_indices = @transform_13, window_bounds = array<i64: 1, 128>}, {pipeline_mode = #tpu.pipeline_mode<synchronous>, transform_indices = @transform_14, window_bounds = array<i64: 1, 128>}, {transform_indices = @transform_15, window_bounds = array<i64: 1, 8, 128>}, {transform_indices = @transform_16, window_bounds = array<i64: 1, 4, 8, 8>}]} {
    %c0 = arith.constant 0 : index
    %c0_0 = arith.constant 0 : index
    %c0_1 = arith.constant 0 : index
    %0 = vector.load %arg1[%c0, %c0_0, %c0_1] : memref<1x8x128xf32, #tpu.memory_space<vmem>>, vector<1x8x128xf32>
    %1 = vector.shape_cast %0 : vector<1x8x128xf32> to vector<8x128xf32>
    %c0_2 = arith.constant 0 : index
    %c0_3 = arith.constant 0 : index
    %2 = vector.load %arg2[%c0_2, %c0_3] : memref<1x128xf32, #tpu.memory_space<vmem>>, vector<1x128xf32>
    %c0_4 = arith.constant 0 : index
    %c0_5 = arith.constant 0 : index
    %3 = vector.load %arg3[%c0_4, %c0_5] : memref<1x128xf32, #tpu.memory_space<vmem>>, vector<1x128xf32>
    %cst = arith.constant dense<0.000000e+00> : vector<8xf32>
    %4 = vector.multi_reduction <add>, %1, %cst [1] : vector<8x128xf32> to vector<8xf32>
    %5 = vector.shape_cast %4 : vector<8xf32> to vector<8x1xf32>
    %cst_6 = arith.constant 1.280000e+02 : f32
    %6 = vector.broadcast %cst_6 : f32 to vector<8x1xf32>
    %7 = arith.divf %5, %6 : vector<8x1xf32>
    %8 = vector.broadcast %7 : vector<8x1xf32> to vector<8x128xf32>
    %9 = arith.subf %1, %8 : vector<8x128xf32>
    %10 = arith.mulf %9, %9 : vector<8x128xf32>
    %cst_7 = arith.constant dense<0.000000e+00> : vector<8xf32>
    %11 = vector.multi_reduction <add>, %10, %cst_7 [1] : vector<8x128xf32> to vector<8xf32>
    %12 = vector.shape_cast %11 : vector<8xf32> to vector<8x1xf32>
    %cst_8 = arith.constant 1.280000e+02 : f32
    %13 = vector.broadcast %cst_8 : f32 to vector<8x1xf32>
    %14 = arith.divf %12, %13 : vector<8x1xf32>
    %15 = vector.broadcast %7 : vector<8x1xf32> to vector<8x128xf32>
    %16 = arith.subf %1, %15 : vector<8x128xf32>
    %cst_9 = arith.constant 9.99999974E-6 : f32
    %17 = vector.broadcast %cst_9 : f32 to vector<8x1xf32>
    %18 = arith.addf %14, %17 : vector<8x1xf32>
    %19 = math.rsqrt %18 : vector<8x1xf32>
    %20 = vector.broadcast %19 : vector<8x1xf32> to vector<8x128xf32>
    %21 = arith.mulf %16, %20 : vector<8x128xf32>
    %22 = vector.broadcast %2 : vector<1x128xf32> to vector<8x128xf32>
    %23 = arith.mulf %21, %22 : vector<8x128xf32>
    %24 = vector.broadcast %3 : vector<1x128xf32> to vector<8x128xf32>
    %25 = arith.addf %23, %24 : vector<8x128xf32>
    %26 = arith.truncf %25 : vector<8x128xf32> to vector<8x128xbf16>
    %c0_10 = arith.constant 0 : index
    %c0_11 = arith.constant 0 : index
    %27 = vector.load %arg4[%c0_10, %c0_11] : memref<128x128xbf16, #tpu.memory_space<vmem>>, vector<128x128xbf16>
    %cst_12 = arith.constant dense<0.000000e+00> : vector<8x128xf32>
    %28 = tpu.matmul %26, %27, %cst_12 {dimension_numbers = #tpu.dot_dimension_numbers<[1], [0], [0], [1], [0, 0, 1, 1], [], []>} : vector<8x128xbf16>, vector<128x128xbf16>, vector<8x128xf32> -> vector<8x128xf32>
    %c0_13 = arith.constant 0 : index
    %c0_14 = arith.constant 0 : index
    %29 = vector.load %arg5[%c0_13, %c0_14] : memref<1x128xf32, #tpu.memory_space<vmem>>, vector<1x128xf32>
    %30 = vector.broadcast %29 : vector<1x128xf32> to vector<8x128xf32>
    %31 = arith.addf %28, %30 : vector<8x128xf32>
    %c0_15 = arith.constant 0 : index
    %c0_16 = arith.constant 0 : index
    %32 = vector.load %arg6[%c0_15, %c0_16] : memref<128x128xbf16, #tpu.memory_space<vmem>>, vector<128x128xbf16>
    %cst_17 = arith.constant dense<0.000000e+00> : vector<8x128xf32>
    %33 = tpu.matmul %26, %32, %cst_17 {dimension_numbers = #tpu.dot_dimension_numbers<[1], [0], [0], [1], [0, 0, 1, 1], [], []>} : vector<8x128xbf16>, vector<128x128xbf16>, vector<8x128xf32> -> vector<8x128xf32>
    %c0_18 = arith.constant 0 : index
    %c0_19 = arith.constant 0 : index
    %34 = vector.load %arg7[%c0_18, %c0_19] : memref<1x128xf32, #tpu.memory_space<vmem>>, vector<1x128xf32>
    %35 = vector.broadcast %34 : vector<1x128xf32> to vector<8x128xf32>
    %36 = arith.addf %33, %35 : vector<8x128xf32>
    %c0_20 = arith.constant 0 : index
    %c0_21 = arith.constant 0 : index
    %37 = vector.load %arg8[%c0_20, %c0_21] : memref<128x128xbf16, #tpu.memory_space<vmem>>, vector<128x128xbf16>
    %cst_22 = arith.constant dense<0.000000e+00> : vector<8x128xf32>
    %38 = tpu.matmul %26, %37, %cst_22 {dimension_numbers = #tpu.dot_dimension_numbers<[1], [0], [0], [1], [0, 0, 1, 1], [], []>} : vector<8x128xbf16>, vector<128x128xbf16>, vector<8x128xf32> -> vector<8x128xf32>
    %c0_23 = arith.constant 0 : index
    %c0_24 = arith.constant 0 : index
    %39 = vector.load %arg9[%c0_23, %c0_24] : memref<1x128xf32, #tpu.memory_space<vmem>>, vector<1x128xf32>
    %40 = vector.broadcast %39 : vector<1x128xf32> to vector<8x128xf32>
    %41 = arith.addf %38, %40 : vector<8x128xf32>
    %c0_25 = arith.constant 0 : index
    %c0_26 = arith.constant 0 : index
    %42 = vector.load %arg10[%c0_25, %c0_26] : memref<8x128xf32, #tpu.memory_space<vmem>>, vector<8x128xf32>
    %c0_27 = arith.constant 0 : index
    %c0_28 = arith.constant 0 : index
    %43 = vector.load %arg11[%c0_27, %c0_28] : memref<8x128xf32, #tpu.memory_space<vmem>>, vector<8x128xf32>
    %44 = tpu.iota {dimensions = array<i32: 1>} : vector<8x128xi32>
    %c2_i32 = arith.constant 2 : i32
    %c0_i32 = arith.constant 0 : i32
    %45 = arith.cmpi eq, %c2_i32, %c0_i32 : i32
    %c1_i32 = arith.constant 1 : i32
    %46 = arith.select %45, %c1_i32, %c2_i32 : i32
    %47 = vector.broadcast %46 : i32 to vector<8x128xi32>
    %48 = arith.remsi %44, %47 : vector<8x128xi32>
    %c0_i32_29 = arith.constant 0 : i32
    %49 = vector.broadcast %c0_i32_29 : i32 to vector<8x128xi32>
    %50 = arith.cmpi ne, %48, %49 : vector<8x128xi32>
    %c0_i32_30 = arith.constant 0 : i32
    %51 = vector.broadcast %c0_i32_30 : i32 to vector<8x128xi32>
    %52 = arith.cmpi slt, %48, %51 : vector<8x128xi32>
    %c0_i32_31 = arith.constant 0 : i32
    %53 = arith.cmpi slt, %46, %c0_i32_31 : i32
    %54 = vector.broadcast %53 : i1 to vector<8x128xi1>
    %55 = vector.broadcast %54 : vector<8x128xi1> to vector<8x128xi1>
    %56 = arith.xori %52, %55 : vector<8x128xi1>
    %57 = arith.andi %56, %50 : vector<8x128xi1>
    %58 = vector.broadcast %46 : i32 to vector<8x128xi32>
    %59 = arith.addi %48, %58 : vector<8x128xi32>
    %60 = arith.select %57, %59, %48 : vector<8x128xi1>, vector<8x128xi32>
    %c0_i32_32 = arith.constant 0 : i32
    %61 = vector.broadcast %c0_i32_32 : i32 to vector<8x128xi32>
    %62 = arith.cmpi eq, %60, %61 : vector<8x128xi32>
    %c127_i32 = arith.constant 127 : i32
    %63 = tpu.dynamic_rotate %31 by %c127_i32 dim 1 : vector<8x128xf32>, i32 -> vector<8x128xf32>
    %c1_i32_33 = arith.constant 1 : i32
    %64 = tpu.dynamic_rotate %31 by %c1_i32_33 dim 1 : vector<8x128xf32>, i32 -> vector<8x128xf32>
    %65 = arith.select %62, %63, %64 : vector<8x128xi1>, vector<8x128xf32>
    %66 = arith.mulf %31, %42 : vector<8x128xf32>
    %67 = arith.mulf %65, %43 : vector<8x128xf32>
    %68 = arith.addf %66, %67 : vector<8x128xf32>
    %cst_34 = arith.constant 0.176776692 : f32
    %69 = vector.broadcast %cst_34 : f32 to vector<8x128xf32>
    %70 = arith.mulf %68, %69 : vector<8x128xf32>
    %71 = arith.truncf %70 : vector<8x128xf32> to vector<8x128xbf16>
    %c127_i32_35 = arith.constant 127 : i32
    %72 = tpu.dynamic_rotate %36 by %c127_i32_35 dim 1 : vector<8x128xf32>, i32 -> vector<8x128xf32>
    %c1_i32_36 = arith.constant 1 : i32
    %73 = tpu.dynamic_rotate %36 by %c1_i32_36 dim 1 : vector<8x128xf32>, i32 -> vector<8x128xf32>
    %74 = arith.select %62, %72, %73 : vector<8x128xi1>, vector<8x128xf32>
    %75 = arith.mulf %36, %42 : vector<8x128xf32>
    %76 = arith.mulf %74, %43 : vector<8x128xf32>
    %77 = arith.addf %75, %76 : vector<8x128xf32>
    %78 = arith.truncf %77 : vector<8x128xf32> to vector<8x128xbf16>
    %79 = arith.truncf %41 : vector<8x128xf32> to vector<8x128xbf16>
    %80 = vector.extract_strided_slice %71 {offsets = [0, 0], sizes = [8, 32], strides = [1, 1]} : vector<8x128xbf16> to vector<8x32xbf16>
    %81 = vector.extract_strided_slice %78 {offsets = [0, 0], sizes = [8, 32], strides = [1, 1]} : vector<8x128xbf16> to vector<8x32xbf16>
    %cst_37 = arith.constant dense<0.000000e+00> : vector<8x8xf32>
    %82 = tpu.matmul %80, %81, %cst_37 {dimension_numbers = #tpu.dot_dimension_numbers<[1], [1], [0], [0], [0, 0, 1, 0], [], []>} : vector<8x32xbf16>, vector<8x32xbf16>, vector<8x8xf32> -> vector<8x8xf32>
    %cst_38 = arith.constant dense<0xFF800000> : vector<8xf32>
    %83 = vector.multi_reduction <maximumf>, %82, %cst_38 [1] : vector<8x8xf32> to vector<8xf32>
    %84 = vector.shape_cast %83 : vector<8xf32> to vector<8x1xf32>
    %85 = vector.broadcast %84 : vector<8x1xf32> to vector<8x8xf32>
    %86 = arith.subf %82, %85 : vector<8x8xf32>
    %87 = math.exp %86 : vector<8x8xf32>
    %cst_39 = arith.constant dense<0.000000e+00> : vector<8xf32>
    %88 = vector.multi_reduction <add>, %87, %cst_39 [1] : vector<8x8xf32> to vector<8xf32>
    %89 = vector.shape_cast %88 : vector<8xf32> to vector<8x1xf32>
    %90 = tpu.reciprocal %89 {approx = true} : vector<8x1xf32> -> vector<8x1xf32>
    %91 = vector.broadcast %90 : vector<8x1xf32> to vector<8x8xf32>
    %92 = arith.mulf %87, %91 : vector<8x8xf32>
    %c0_40 = arith.constant 0 : index
    %c0_41 = arith.constant 0 : index
    %c0_42 = arith.constant 0 : index
    %c0_43 = arith.constant 0 : index
    %93 = vector.load %arg17[%c0_40, %c0_41, %c0_42, %c0_43] : memref<1x4x8x8xf32, #tpu.memory_space<vmem>>, vector<1x1x8x8xf32>
    %94 = vector.shape_cast %93 : vector<1x1x8x8xf32> to vector<8x8xf32>
    %95 = vector.shape_cast %92 : vector<8x8xf32> to vector<1x1x8x8xf32>
    tpu.vector_store %arg17[%c0_40, %c0_41, %c0_42, %c0_43], %95 {strides = array<i32>} : memref<1x4x8x8xf32, #tpu.memory_space<vmem>>, vector<1x1x8x8xf32>,
    %96 = arith.truncf %92 : vector<8x8xf32> to vector<8x8xbf16>
    %97 = vector.extract_strided_slice %79 {offsets = [0, 0], sizes = [8, 32], strides = [1, 1]} : vector<8x128xbf16> to vector<8x32xbf16>
    %cst_44 = arith.constant dense<0.000000e+00> : vector<8x32xf32>
    %98 = tpu.matmul %96, %97, %cst_44 {dimension_numbers = #tpu.dot_dimension_numbers<[1], [0], [0], [1], [0, 0, 1, 1], [], []>} : vector<8x8xbf16>, vector<8x32xbf16>, vector<8x32xf32> -> vector<8x32xf32>
    %99 = vector.extract_strided_slice %71 {offsets = [0, 32], sizes = [8, 32], strides = [1, 1]} : vector<8x128xbf16> to vector<8x32xbf16>
    %100 = vector.extract_strided_slice %78 {offsets = [0, 32], sizes = [8, 32], strides = [1, 1]} : vector<8x128xbf16> to vector<8x32xbf16>
    %cst_45 = arith.constant dense<0.000000e+00> : vector<8x8xf32>
    %101 = tpu.matmul %99, %100, %cst_45 {dimension_numbers = #tpu.dot_dimension_numbers<[1], [1], [0], [0], [0, 0, 1, 0], [], []>} : vector<8x32xbf16>, vector<8x32xbf16>, vector<8x8xf32> -> vector<8x8xf32>
    %cst_46 = arith.constant dense<0xFF800000> : vector<8xf32>
    %102 = vector.multi_reduction <maximumf>, %101, %cst_46 [1] : vector<8x8xf32> to vector<8xf32>
    %103 = vector.shape_cast %102 : vector<8xf32> to vector<8x1xf32>
    %104 = vector.broadcast %103 : vector<8x1xf32> to vector<8x8xf32>
    %105 = arith.subf %101, %104 : vector<8x8xf32>
    %106 = math.exp %105 : vector<8x8xf32>
    %cst_47 = arith.constant dense<0.000000e+00> : vector<8xf32>
    %107 = vector.multi_reduction <add>, %106, %cst_47 [1] : vector<8x8xf32> to vector<8xf32>
    %108 = vector.shape_cast %107 : vector<8xf32> to vector<8x1xf32>
    %109 = tpu.reciprocal %108 {approx = true} : vector<8x1xf32> -> vector<8x1xf32>
    %110 = vector.broadcast %109 : vector<8x1xf32> to vector<8x8xf32>
    %111 = arith.mulf %106, %110 : vector<8x8xf32>
    %c0_48 = arith.constant 0 : index
    %c1 = arith.constant 1 : index
    %c0_49 = arith.constant 0 : index
    %c0_50 = arith.constant 0 : index
    %112 = vector.load %arg17[%c0_48, %c1, %c0_49, %c0_50] : memref<1x4x8x8xf32, #tpu.memory_space<vmem>>, vector<1x1x8x8xf32>
    %113 = vector.shape_cast %112 : vector<1x1x8x8xf32> to vector<8x8xf32>
    %114 = vector.shape_cast %111 : vector<8x8xf32> to vector<1x1x8x8xf32>
    tpu.vector_store %arg17[%c0_48, %c1, %c0_49, %c0_50], %114 {strides = array<i32>} : memref<1x4x8x8xf32, #tpu.memory_space<vmem>>, vector<1x1x8x8xf32>,
    %115 = arith.truncf %111 : vector<8x8xf32> to vector<8x8xbf16>
    %116 = vector.extract_strided_slice %79 {offsets = [0, 32], sizes = [8, 32], strides = [1, 1]} : vector<8x128xbf16> to vector<8x32xbf16>
    %cst_51 = arith.constant dense<0.000000e+00> : vector<8x32xf32>
    %117 = tpu.matmul %115, %116, %cst_51 {dimension_numbers = #tpu.dot_dimension_numbers<[1], [0], [0], [1], [0, 0, 1, 1], [], []>} : vector<8x8xbf16>, vector<8x32xbf16>, vector<8x32xf32> -> vector<8x32xf32>
    %118 = vector.extract_strided_slice %71 {offsets = [0, 64], sizes = [8, 32], strides = [1, 1]} : vector<8x128xbf16> to vector<8x32xbf16>
    %119 = vector.extract_strided_slice %78 {offsets = [0, 64], sizes = [8, 32], strides = [1, 1]} : vector<8x128xbf16> to vector<8x32xbf16>
    %cst_52 = arith.constant dense<0.000000e+00> : vector<8x8xf32>
    %120 = tpu.matmul %118, %119, %cst_52 {dimension_numbers = #tpu.dot_dimension_numbers<[1], [1], [0], [0], [0, 0, 1, 0], [], []>} : vector<8x32xbf16>, vector<8x32xbf16>, vector<8x8xf32> -> vector<8x8xf32>
    %cst_53 = arith.constant dense<0xFF800000> : vector<8xf32>
    %121 = vector.multi_reduction <maximumf>, %120, %cst_53 [1] : vector<8x8xf32> to vector<8xf32>
    %122 = vector.shape_cast %121 : vector<8xf32> to vector<8x1xf32>
    %123 = vector.broadcast %122 : vector<8x1xf32> to vector<8x8xf32>
    %124 = arith.subf %120, %123 : vector<8x8xf32>
    %125 = math.exp %124 : vector<8x8xf32>
    %cst_54 = arith.constant dense<0.000000e+00> : vector<8xf32>
    %126 = vector.multi_reduction <add>, %125, %cst_54 [1] : vector<8x8xf32> to vector<8xf32>
    %127 = vector.shape_cast %126 : vector<8xf32> to vector<8x1xf32>
    %128 = tpu.reciprocal %127 {approx = true} : vector<8x1xf32> -> vector<8x1xf32>
    %129 = vector.broadcast %128 : vector<8x1xf32> to vector<8x8xf32>
    %130 = arith.mulf %125, %129 : vector<8x8xf32>
    %c0_55 = arith.constant 0 : index
    %c2 = arith.constant 2 : index
    %c0_56 = arith.constant 0 : index
    %c0_57 = arith.constant 0 : index
    %131 = vector.load %arg17[%c0_55, %c2, %c0_56, %c0_57] : memref<1x4x8x8xf32, #tpu.memory_space<vmem>>, vector<1x1x8x8xf32>
    %132 = vector.shape_cast %131 : vector<1x1x8x8xf32> to vector<8x8xf32>
    %133 = vector.shape_cast %130 : vector<8x8xf32> to vector<1x1x8x8xf32>
    tpu.vector_store %arg17[%c0_55, %c2, %c0_56, %c0_57], %133 {strides = array<i32>} : memref<1x4x8x8xf32, #tpu.memory_space<vmem>>, vector<1x1x8x8xf32>,
    %134 = arith.truncf %130 : vector<8x8xf32> to vector<8x8xbf16>
    %135 = vector.extract_strided_slice %79 {offsets = [0, 64], sizes = [8, 32], strides = [1, 1]} : vector<8x128xbf16> to vector<8x32xbf16>
    %cst_58 = arith.constant dense<0.000000e+00> : vector<8x32xf32>
    %136 = tpu.matmul %134, %135, %cst_58 {dimension_numbers = #tpu.dot_dimension_numbers<[1], [0], [0], [1], [0, 0, 1, 1], [], []>} : vector<8x8xbf16>, vector<8x32xbf16>, vector<8x32xf32> -> vector<8x32xf32>
    %137 = vector.extract_strided_slice %71 {offsets = [0, 96], sizes = [8, 32], strides = [1, 1]} : vector<8x128xbf16> to vector<8x32xbf16>
    %138 = vector.extract_strided_slice %78 {offsets = [0, 96], sizes = [8, 32], strides = [1, 1]} : vector<8x128xbf16> to vector<8x32xbf16>
    %cst_59 = arith.constant dense<0.000000e+00> : vector<8x8xf32>
    %139 = tpu.matmul %137, %138, %cst_59 {dimension_numbers = #tpu.dot_dimension_numbers<[1], [1], [0], [0], [0, 0, 1, 0], [], []>} : vector<8x32xbf16>, vector<8x32xbf16>, vector<8x8xf32> -> vector<8x8xf32>
    %cst_60 = arith.constant dense<0xFF800000> : vector<8xf32>
    %140 = vector.multi_reduction <maximumf>, %139, %cst_60 [1] : vector<8x8xf32> to vector<8xf32>
    %141 = vector.shape_cast %140 : vector<8xf32> to vector<8x1xf32>
    %142 = vector.broadcast %141 : vector<8x1xf32> to vector<8x8xf32>
    %143 = arith.subf %139, %142 : vector<8x8xf32>
    %144 = math.exp %143 : vector<8x8xf32>
    %cst_61 = arith.constant dense<0.000000e+00> : vector<8xf32>
    %145 = vector.multi_reduction <add>, %144, %cst_61 [1] : vector<8x8xf32> to vector<8xf32>
    %146 = vector.shape_cast %145 : vector<8xf32> to vector<8x1xf32>
    %147 = tpu.reciprocal %146 {approx = true} : vector<8x1xf32> -> vector<8x1xf32>
    %148 = vector.broadcast %147 : vector<8x1xf32> to vector<8x8xf32>
    %149 = arith.mulf %144, %148 : vector<8x8xf32>
    %c0_62 = arith.constant 0 : index
    %c3 = arith.constant 3 : index
    %c0_63 = arith.constant 0 : index
    %c0_64 = arith.constant 0 : index
    %150 = vector.load %arg17[%c0_62, %c3, %c0_63, %c0_64] : memref<1x4x8x8xf32, #tpu.memory_space<vmem>>, vector<1x1x8x8xf32>
    %151 = vector.shape_cast %150 : vector<1x1x8x8xf32> to vector<8x8xf32>
    %152 = vector.shape_cast %149 : vector<8x8xf32> to vector<1x1x8x8xf32>
    tpu.vector_store %arg17[%c0_62, %c3, %c0_63, %c0_64], %152 {strides = array<i32>} : memref<1x4x8x8xf32, #tpu.memory_space<vmem>>, vector<1x1x8x8xf32>,
    %153 = arith.truncf %149 : vector<8x8xf32> to vector<8x8xbf16>
    %154 = vector.extract_strided_slice %79 {offsets = [0, 96], sizes = [8, 32], strides = [1, 1]} : vector<8x128xbf16> to vector<8x32xbf16>
    %cst_65 = arith.constant dense<0.000000e+00> : vector<8x32xf32>
    %155 = tpu.matmul %153, %154, %cst_65 {dimension_numbers = #tpu.dot_dimension_numbers<[1], [0], [0], [1], [0, 0, 1, 1], [], []>} : vector<8x8xbf16>, vector<8x32xbf16>, vector<8x32xf32> -> vector<8x32xf32>
    %156 = tpu.concatenate %98, %117, %136, %155 in 1 : vector<8x32xf32>, vector<8x32xf32>, vector<8x32xf32>, vector<8x32xf32> -> vector<8x128xf32>
    %157 = arith.truncf %156 : vector<8x128xf32> to vector<8x128xbf16>
    %c0_66 = arith.constant 0 : index
    %c0_67 = arith.constant 0 : index
    %158 = vector.load %arg12[%c0_66, %c0_67] : memref<128x128xbf16, #tpu.memory_space<vmem>>, vector<128x128xbf16>
    %cst_68 = arith.constant dense<0.000000e+00> : vector<8x128xf32>
    %159 = tpu.matmul %157, %158, %cst_68 {dimension_numbers = #tpu.dot_dimension_numbers<[1], [0], [0], [1], [0, 0, 1, 1], [], []>} : vector<8x128xbf16>, vector<128x128xbf16>, vector<8x128xf32> -> vector<8x128xf32>
    %c0_69 = arith.constant 0 : index
    %c0_70 = arith.constant 0 : index
    %160 = vector.load %arg13[%c0_69, %c0_70] : memref<1x128xf32, #tpu.memory_space<vmem>>, vector<1x128xf32>
    %161 = vector.broadcast %160 : vector<1x128xf32> to vector<8x128xf32>
    %162 = arith.addf %159, %161 : vector<8x128xf32>
    %163 = arith.addf %1, %162 : vector<8x128xf32>
    %c0_71 = arith.constant 0 : index
    %c0_72 = arith.constant 0 : index
    %164 = vector.load %arg14[%c0_71, %c0_72] : memref<1x128xf32, #tpu.memory_space<vmem>>, vector<1x128xf32>
    %c0_73 = arith.constant 0 : index
    %c0_74 = arith.constant 0 : index
    %165 = vector.load %arg15[%c0_73, %c0_74] : memref<1x128xf32, #tpu.memory_space<vmem>>, vector<1x128xf32>
    %cst_75 = arith.constant dense<0.000000e+00> : vector<8xf32>
    %166 = vector.multi_reduction <add>, %163, %cst_75 [1] : vector<8x128xf32> to vector<8xf32>
    %167 = vector.shape_cast %166 : vector<8xf32> to vector<8x1xf32>
    %cst_76 = arith.constant 1.280000e+02 : f32
    %168 = vector.broadcast %cst_76 : f32 to vector<8x1xf32>
    %169 = arith.divf %167, %168 : vector<8x1xf32>
    %170 = vector.broadcast %169 : vector<8x1xf32> to vector<8x128xf32>
    %171 = arith.subf %163, %170 : vector<8x128xf32>
    %172 = arith.mulf %171, %171 : vector<8x128xf32>
    %cst_77 = arith.constant dense<0.000000e+00> : vector<8xf32>
    %173 = vector.multi_reduction <add>, %172, %cst_77 [1] : vector<8x128xf32> to vector<8xf32>
    %174 = vector.shape_cast %173 : vector<8xf32> to vector<8x1xf32>
    %cst_78 = arith.constant 1.280000e+02 : f32
    %175 = vector.broadcast %cst_78 : f32 to vector<8x1xf32>
    %176 = arith.divf %174, %175 : vector<8x1xf32>
    %177 = vector.broadcast %169 : vector<8x1xf32> to vector<8x128xf32>
    %178 = arith.subf %163, %177 : vector<8x128xf32>
    %cst_79 = arith.constant 9.99999974E-6 : f32
    %179 = vector.broadcast %cst_79 : f32 to vector<8x1xf32>
    %180 = arith.addf %176, %179 : vector<8x1xf32>
    %181 = math.rsqrt %180 : vector<8x1xf32>
    %182 = vector.broadcast %181 : vector<8x1xf32> to vector<8x128xf32>
    %183 = arith.mulf %178, %182 : vector<8x128xf32>
    %184 = vector.broadcast %164 : vector<1x128xf32> to vector<8x128xf32>
    %185 = arith.mulf %183, %184 : vector<8x128xf32>
    %186 = vector.broadcast %165 : vector<1x128xf32> to vector<8x128xf32>
    %187 = arith.addf %185, %186 : vector<8x128xf32>
    %c0_80 = arith.constant 0 : index
    %c0_81 = arith.constant 0 : index
    %c0_82 = arith.constant 0 : index
    %188 = vector.load %arg16[%c0_80, %c0_81, %c0_82] : memref<1x8x128xf32, #tpu.memory_space<vmem>>, vector<1x8x128xf32>
    %189 = vector.shape_cast %188 : vector<1x8x128xf32> to vector<8x128xf32>
    %190 = vector.shape_cast %187 : vector<8x128xf32> to vector<1x8x128xf32>
    tpu.vector_store %arg16[%c0_80, %c0_81, %c0_82], %190 {strides = array<i32>} : memref<1x8x128xf32, #tpu.memory_space<vmem>>, vector<1x8x128xf32>,
    return
  }
  func.func @transform_0(%arg0: i32) -> (i32, i32, i32) {
    %c0_i32 = arith.constant 0 : i32
    %c0_i32_0 = arith.constant 0 : i32
    %c0_i32_1 = arith.constant 0 : i32
    return %arg0, %c0_i32, %c0_i32_0 : i32, i32, i32
  }
  func.func @transform_1(%arg0: i32) -> (i32, i32) {
    %c0_i32 = arith.constant 0 : i32
    %c0_i32_0 = arith.constant 0 : i32
    %c0_i32_1 = arith.constant 0 : i32
    return %c0_i32, %c0_i32_0 : i32, i32
  }
  func.func @transform_2(%arg0: i32) -> (i32, i32) {
    %c0_i32 = arith.constant 0 : i32
    %c0_i32_0 = arith.constant 0 : i32
    %c0_i32_1 = arith.constant 0 : i32
    return %c0_i32, %c0_i32_0 : i32, i32
  }
  func.func @transform_3(%arg0: i32) -> (i32, i32) {
    %c0_i32 = arith.constant 0 : i32
    %c0_i32_0 = arith.constant 0 : i32
    %c0_i32_1 = arith.constant 0 : i32
    return %c0_i32, %c0_i32_0 : i32, i32
  }
  func.func @transform_4(%arg0: i32) -> (i32, i32) {
    %c0_i32 = arith.constant 0 : i32
    %c0_i32_0 = arith.constant 0 : i32
    %c0_i32_1 = arith.constant 0 : i32
    return %c0_i32, %c0_i32_0 : i32, i32
  }
  func.func @transform_5(%arg0: i32) -> (i32, i32) {
    %c0_i32 = arith.constant 0 : i32
    %c0_i32_0 = arith.constant 0 : i32
    %c0_i32_1 = arith.constant 0 : i32
    return %c0_i32, %c0_i32_0 : i32, i32
  }
  func.func @transform_6(%arg0: i32) -> (i32, i32) {
    %c0_i32 = arith.constant 0 : i32
    %c0_i32_0 = arith.constant 0 : i32
    %c0_i32_1 = arith.constant 0 : i32
    return %c0_i32, %c0_i32_0 : i32, i32
  }
  func.func @transform_7(%arg0: i32) -> (i32, i32) {
    %c0_i32 = arith.constant 0 : i32
    %c0_i32_0 = arith.constant 0 : i32
    %c0_i32_1 = arith.constant 0 : i32
    return %c0_i32, %c0_i32_0 : i32, i32
  }
  func.func @transform_8(%arg0: i32) -> (i32, i32) {
    %c0_i32 = arith.constant 0 : i32
    %c0_i32_0 = arith.constant 0 : i32
    %c0_i32_1 = arith.constant 0 : i32
    return %c0_i32, %c0_i32_0 : i32, i32
  }
  func.func @transform_9(%arg0: i32) -> (i32, i32) {
    %c0_i32 = arith.constant 0 : i32
    %c0_i32_0 = arith.constant 0 : i32
    %c0_i32_1 = arith.constant 0 : i32
    return %c0_i32, %c0_i32_0 : i32, i32
  }
  func.func @transform_10(%arg0: i32) -> (i32, i32) {
    %c0_i32 = arith.constant 0 : i32
    %c0_i32_0 = arith.constant 0 : i32
    %c0_i32_1 = arith.constant 0 : i32
    return %c0_i32, %c0_i32_0 : i32, i32
  }
  func.func @transform_11(%arg0: i32) -> (i32, i32) {
    %c0_i32 = arith.constant 0 : i32
    %c0_i32_0 = arith.constant 0 : i32
    %c0_i32_1 = arith.constant 0 : i32
    return %c0_i32, %c0_i32_0 : i32, i32
  }
  func.func @transform_12(%arg0: i32) -> (i32, i32) {
    %c0_i32 = arith.constant 0 : i32
    %c0_i32_0 = arith.constant 0 : i32
    %c0_i32_1 = arith.constant 0 : i32
    return %c0_i32, %c0_i32_0 : i32, i32
  }
  func.func @transform_13(%arg0: i32) -> (i32, i32) {
    %c0_i32 = arith.constant 0 : i32
    %c0_i32_0 = arith.constant 0 : i32
    %c0_i32_1 = arith.constant 0 : i32
    return %c0_i32, %c0_i32_0 : i32, i32
  }
  func.func @transform_14(%arg0: i32) -> (i32, i32) {
    %c0_i32 = arith.constant 0 : i32
    %c0_i32_0 = arith.constant 0 : i32
    %c0_i32_1 = arith.constant 0 : i32
    return %c0_i32, %c0_i32_0 : i32, i32
  }
  func.func @transform_15(%arg0: i32) -> (i32, i32, i32) {
    %c0_i32 = arith.constant 0 : i32
    %c0_i32_0 = arith.constant 0 : i32
    %c0_i32_1 = arith.constant 0 : i32
    return %arg0, %c0_i32, %c0_i32_0 : i32, i32, i32
  }
  func.func @transform_16(%arg0: i32) -> (i32, i32, i32, i32) {
    %c0_i32 = arith.constant 0 : i32
    %c0_i32_0 = arith.constant 0 : i32
    %c0_i32_1 = arith.constant 0 : i32
    %c0_i32_2 = arith.constant 0 : i32
    return %arg0, %c0_i32, %c0_i32_0, %c0_i32_1 : i32, i32, i32, i32
  }
}

</mosaic_0001>

<llo_original>
// kernel: tpu_custom_call.1
$region0: #{tpu_custom_call.1}
  #allocation0 [shape = 'u32[]', space=smem, size = 0x4, offset = 0x4, fixed_abs, tag = 'smem constant byte address 0x4 - core index']
  #allocation1 [shape = 'u32[144,128]{1,0:T(1,128)}', space=vmem, size = 0x12000, scoped, tag = 'internal scratch']
  %s0 = inlined_call_operand.hbm [shape: f32[2,8,128], index: 0, kind: input, shape index: {}]
  %s1 = inlined_call_operand.vmem [shape: f32[1,128], index: 1, kind: input, shape index: {}]
  %s2 = inlined_call_operand.vmem [shape: f32[1,128], index: 2, kind: input, shape index: {}]
  %s3 = inlined_call_operand.hbm [shape: bf16[128,128], index: 3, kind: input, shape index: {}]
  %s4 = inlined_call_operand.hbm [shape: f32[1,128], index: 4, kind: input, shape index: {}]
  %s5 = inlined_call_operand.hbm [shape: bf16[128,128], index: 5, kind: input, shape index: {}]
  %s6 = inlined_call_operand.vmem [shape: f32[1,128], index: 6, kind: input, shape index: {}]
  %s7 = inlined_call_operand.hbm [shape: bf16[128,128], index: 7, kind: input, shape index: {}]
  %s8 = inlined_call_operand.vmem [shape: f32[1,128], index: 8, kind: input, shape index: {}]
  %s9 = inlined_call_operand.vmem [shape: f32[8,128], index: 9, kind: input, shape index: {}]
  %s10 = inlined_call_operand.vmem [shape: f32[8,128], index: 10, kind: input, shape index: {}]
  %s11 = inlined_call_operand.hbm [shape: bf16[128,128], index: 11, kind: input, shape index: {}]
  %s12 = inlined_call_operand.vmem [shape: f32[1,128], index: 12, kind: input, shape index: {}]
  %s13 = inlined_call_operand.vmem [shape: f32[1,128], index: 13, kind: input, shape index: {}]
  %s14 = inlined_call_operand.vmem [shape: f32[1,128], index: 14, kind: input, shape index: {}]
  %s15 = inlined_call_operand.hbm [shape: f32[2,8,128], index: 15, kind: output, shape index: {0}]
  %s16 = inlined_call_operand.hbm [shape: f32[2,4,8,8], index: 16, kind: output, shape index: {1}]
  %17 = xla_tuple %s15, %s16
  %s18 = sld [smem:[#allocation0]]
  $region125: #{tpu_custom_call.1} parent=0
    _
  %s20 = ssub.s32 1, %s18
  %s21 = scalar_select 0, %s20, %s18
  $region1: #{tpu_custom_call.1} parent=0
    #allocation2 [shape = 'u8[8192]{0}', space=vmem, size = 0x2000, scoped, tag = 'input window, operand 0']
    #allocation3 [shape = 's32[2]{0}', space=sflag, size = 0x8, scoped, tag = 'scoped memory for tpu_custom_call.1']
    #allocation4 [shape = 's32[2]{0}', space=sflag, size = 0x8, scoped, tag = 'scoped memory for tpu_custom_call.1']
    #allocation5 [shape = 'u8[32768]{0}', space=vmem, size = 0x8000, scoped, tag = 'input window, operand 3, single buffered']
    #allocation6 [shape = 's32[1]{0}', space=sflag, size = 0x4, scoped, tag = 'scoped memory for tpu_custom_call.1']
    #allocation7 [shape = 'u8[512]{0}', space=vmem, size = 0x400, scoped, tag = 'input window, operand 4, single buffered']
    #allocation8 [shape = 'u8[32768]{0}', space=vmem, size = 0x8000, scoped, tag = 'input window, operand 5, single buffered']
    #allocation9 [shape = 's32[1]{0}', space=sflag, size = 0x4, scoped, tag = 'scoped memory for tpu_custom_call.1']
    #allocation10 [shape = 'u8[32768]{0}', space=vmem, size = 0x8000, scoped, tag = 'input window, operand 7, single buffered']
    #allocation11 [shape = 'u8[32768]{0}', space=vmem, size = 0x8000, scoped, tag = 'input window, operand 11, single buffered']
    #allocation12 [shape = 's32[1]{0}', space=sflag, size = 0x4, scoped, tag = 'scoped memory for tpu_custom_call.1']
    #allocation13 [shape = 'u8[8192]{0}', space=vmem, size = 0x2000, scoped, tag = 'output window, operand 0']
    #allocation14 [shape = 'u8[32768]{0}', space=vmem, size = 0x8000, scoped, tag = 'output window, operand 1']
    #allocation15 [shape = 's32[2]{0}', space=sflag, size = 0x8, scoped, tag = 'scoped memory for tpu_custom_call.1']
    %22 = vsyncpa [#allocation3], 0
    %s23 = scalar_lea.sflag [#allocation3], 1
    %24 = vsyncpa %s23, 0
    %25 = vsyncpa [#allocation6], 0
    %26 = vsyncpa [#allocation9], 0
    %27 = vsyncpa [#allocation12], 0
    %28 = vsyncpa [#allocation4], 0
    %s29 = scalar_lea.sflag [#allocation4], 1
    %30 = vsyncpa %s29, 0
    %31 = vsyncpa [#allocation15], 0
    %s32 = scalar_lea.sflag [#allocation15], 1
    %33 = vsyncpa %s32, 0
    loop: start=0, step=1, limit=4
    $region2: #{tpu_custom_call.1} parent=1 // loop_pre_header
      _
    $region3: #{tpu_custom_call.1} parent=1 // loop_header
      %s35 = sphi 0, %s39
      %p36 = scmp.ge.s32.totalorder %s35, 4
      %s45 = sphi 0, %s47
      %s48 = sphi 0, %s45
      %s49 = sphi 0, %s48
      %s65 = sphi 0, %s49
      %s69 = sphi 0, %s69
      %s71 = sphi 0, %s69
      %s72 = sphi 0, %s71
      %s86 = sphi 0, %s72
      %s90 = sphi 0, %s90
      %s92 = sphi 0, %s90
      %s93 = sphi 0, %s92
      %s107 = sphi 0, %s93
      %s111 = sphi 0, %s111
      %s113 = sphi 0, %s111
      %s114 = sphi 0, %s113
      %s128 = sphi 0, %s114
      %s132 = sphi 0, %s132
      %s134 = sphi 0, %s132
      %s135 = sphi 0, %s134
      %s149 = sphi 0, %s135
      %s153 = sphi 0, %s153
      %s155 = sphi 0, %s153
      %s156 = sphi 0, %s155
      %s170 = sphi 0, %s156
      %s174 = sphi 0, %s174
      %s176 = sphi 0, %s174
      %s177 = sphi 0, %s176
      %s191 = sphi 0, %s177
      %s195 = sphi 0, %s195
      %s197 = sphi 0, %s195
      %s198 = sphi 0, %s197
      %s212 = sphi 0, %s198
      %s216 = sphi 0, %s216
      %s218 = sphi 0, %s216
      %s219 = sphi 0, %s218
      %s233 = sphi 0, %s219
      %s237 = sphi 0, %s237
      %s239 = sphi 0, %s237
      %s240 = sphi 0, %s239
      %s254 = sphi 0, %s240
      %s258 = sphi 0, %s258
      %s260 = sphi 0, %s258
      %s261 = sphi 0, %s260
      %s275 = sphi 0, %s261
      %s279 = sphi 0, %s279
      %s281 = sphi 0, %s279
      %s282 = sphi 0, %s281
      %s296 = sphi 0, %s282
      %s300 = sphi 0, %s300
      %s302 = sphi 0, %s300
      %s303 = sphi 0, %s302
      %s317 = sphi 0, %s303
      %s321 = sphi 0, %s321
      %s323 = sphi 0, %s321
      %s324 = sphi 0, %s323
      %s338 = sphi 0, %s324
      %s342 = sphi 0, %s342
      %s344 = sphi 0, %s342
      %s345 = sphi 0, %s344
      %s359 = sphi 0, %s345
      %s365 = sphi 0, %s367
      %s368 = sphi 0, %s365
      %s369 = sphi 0, %s368
      %s385 = sphi 0, %s369
      %s391 = sphi 0, %s393
      %s394 = sphi 0, %s391
      %s395 = sphi 0, %s394
      %s411 = sphi 0, %s395
    $region4: #{tpu_custom_call.1} parent=1 // loop_header_branch
      %38 = sbr.rel (%p36) target = $region8
    $region5: #{tpu_custom_call.1} parent=1 // loop_body
      %s40 = ssub.s32 %s35, 1
      %s41 = ssub.s32 %s35, 2
      %s42 = sadd.s32 %s35, 1
      %s43 = ssub.s32 %s35, %s42
      %p44 = scmp.eq.s32.totalorder %s43, 0
      %s46 = sadd.s32 %s45, 1
      %s47 = scalar_select %p44, %s45, %s46
      %p50 = pneg %p44
      %p51 = scmp.eq.s32.totalorder %s35, 1
      %p52 = por %p50, %p51
      %p53 = scmp.ne.s32.totalorder %s45, %s48
      %p54 = scmp.eq.s32.totalorder %s35, 0
      %p55 = por %p53, %p54
      %p56 = scmp.ne.s32.totalorder %s45, %s48
      %p57 = scmp.eq.s32.totalorder %s40, 1
      %p58 = por %p56, %p57
      %p59 = scmp.ne.s32.totalorder %s48, %s49
      %p60 = scmp.eq.s32.totalorder %s40, 0
      %p61 = por %p59, %p60
      %p62 = scmp.ne.s32.totalorder %s48, %s49
      %p63 = scmp.eq.s32.totalorder %s41, 1
      %p64 = por %p62, %p63
      %p66 = scmp.ne.s32.totalorder %s49, %s65
      %p67 = scmp.eq.s32.totalorder %s41, 0
      %p68 = por %p66, %p67
      %s70 = sadd.s32 %s69, 1
      %p73 = scmp.eq.s32.totalorder %s35, 1
      %p74 = scmp.ne.s32.totalorder %s69, %s71
      %p75 = scmp.eq.s32.totalorder %s35, 0
      %p76 = por %p74, %p75
      %p77 = scmp.ne.s32.totalorder %s69, %s71
      %p78 = scmp.eq.s32.totalorder %s40, 1
      %p79 = por %p77, %p78
      %p80 = scmp.ne.s32.totalorder %s71, %s72
      %p81 = scmp.eq.s32.totalorder %s40, 0
      %p82 = por %p80, %p81
      %p83 = scmp.ne.s32.totalorder %s71, %s72
      %p84 = scmp.eq.s32.totalorder %s41, 1
      %p85 = por %p83, %p84
      %p87 = scmp.ne.s32.totalorder %s72, %s86
      %p88 = scmp.eq.s32.totalorder %s41, 0
      %p89 = por %p87, %p88
      %s91 = sadd.s32 %s90, 1
      %p94 = scmp.eq.s32.totalorder %s35, 1
      %p95 = scmp.ne.s32.totalorder %s90, %s92
      %p96 = scmp.eq.s32.totalorder %s35, 0
      %p97 = por %p95, %p96
      %p98 = scmp.ne.s32.totalorder %s90, %s92
      %p99 = scmp.eq.s32.totalorder %s40, 1
      %p100 = por %p98, %p99
      %p101 = scmp.ne.s32.totalorder %s92, %s93
      %p102 = scmp.eq.s32.totalorder %s40, 0
      %p103 = por %p101, %p102
      %p104 = scmp.ne.s32.totalorder %s92, %s93
      %p105 = scmp.eq.s32.totalorder %s41, 1
      %p106 = por %p104, %p105
      %p108 = scmp.ne.s32.totalorder %s93, %s107
      %p109 = scmp.eq.s32.totalorder %s41, 0
      %p110 = por %p108, %p109
      %s112 = sadd.s32 %s111, 1
      %p115 = scmp.eq.s32.totalorder %s35, 1
      %p116 = scmp.ne.s32.totalorder %s111, %s113
      %p117 = scmp.eq.s32.totalorder %s35, 0
      %p118 = por %p116, %p117
      %p119 = scmp.ne.s32.totalorder %s111, %s113
      %p120 = scmp.eq.s32.totalorder %s40, 1
      %p121 = por %p119, %p120
      %p122 = scmp.ne.s32.totalorder %s113, %s114
      %p123 = scmp.eq.s32.totalorder %s40, 0
      %p124 = por %p122, %p123
      %p125 = scmp.ne.s32.totalorder %s113, %s114
      %p126 = scmp.eq.s32.totalorder %s41, 1
      %p127 = por %p125, %p126
      %p129 = scmp.ne.s32.totalorder %s114, %s128
      %p130 = scmp.eq.s32.totalorder %s41, 0
      %p131 = por %p129, %p130
      %s133 = sadd.s32 %s132, 1
      %p136 = scmp.eq.s32.totalorder %s35, 1
      %p137 = scmp.ne.s32.totalorder %s132, %s134
      %p138 = scmp.eq.s32.totalorder %s35, 0
      %p139 = por %p137, %p138
      %p140 = scmp.ne.s32.totalorder %s132, %s134
      %p141 = scmp.eq.s32.totalorder %s40, 1
      %p142 = por %p140, %p141
      %p143 = scmp.ne.s32.totalorder %s134, %s135
      %p144 = scmp.eq.s32.totalorder %s40, 0
      %p145 = por %p143, %p144
      %p146 = scmp.ne.s32.totalorder %s134, %s135
      %p147 = scmp.eq.s32.totalorder %s41, 1
      %p148 = por %p146, %p147
      %p150 = scmp.ne.s32.totalorder %s135, %s149
      %p151 = scmp.eq.s32.totalorder %s41, 0
      %p152 = por %p150, %p151
      %s154 = sadd.s32 %s153, 1
      %p157 = scmp.eq.s32.totalorder %s35, 1
      %p158 = scmp.ne.s32.totalorder %s153, %s155
      %p159 = scmp.eq.s32.totalorder %s35, 0
      %p160 = por %p158, %p159
      %p161 = scmp.ne.s32.totalorder %s153, %s155
      %p162 = scmp.eq.s32.totalorder %s40, 1
      %p163 = por %p161, %p162
      %p164 = scmp.ne.s32.totalorder %s155, %s156
      %p165 = scmp.eq.s32.totalorder %s40, 0
      %p166 = por %p164, %p165
      %p167 = scmp.ne.s32.totalorder %s155, %s156
      %p168 = scmp.eq.s32.totalorder %s41, 1
      %p169 = por %p167, %p168
      %p171 = scmp.ne.s32.totalorder %s156, %s170
      %p172 = scmp.eq.s32.totalorder %s41, 0
      %p173 = por %p171, %p172
      %s175 = sadd.s32 %s174, 1
      %p178 = scmp.eq.s32.totalorder %s35, 1
      %p179 = scmp.ne.s32.totalorder %s174, %s176
      %p180 = scmp.eq.s32.totalorder %s35, 0
      %p181 = por %p179, %p180
      %p182 = scmp.ne.s32.totalorder %s174, %s176
      %p183 = scmp.eq.s32.totalorder %s40, 1
      %p184 = por %p182, %p183
      %p185 = scmp.ne.s32.totalorder %s176, %s177
      %p186 = scmp.eq.s32.totalorder %s40, 0
      %p187 = por %p185, %p186
      %p188 = scmp.ne.s32.totalorder %s176, %s177
      %p189 = scmp.eq.s32.totalorder %s41, 1
      %p190 = por %p188, %p189
      %p192 = scmp.ne.s32.totalorder %s177, %s191
      %p193 = scmp.eq.s32.totalorder %s41, 0
      %p194 = por %p192, %p193
      %s196 = sadd.s32 %s195, 1
      %p199 = scmp.eq.s32.totalorder %s35, 1
      %p200 = scmp.ne.s32.totalorder %s195, %s197
      %p201 = scmp.eq.s32.totalorder %s35, 0
      %p202 = por %p200, %p201
      %p203 = scmp.ne.s32.totalorder %s195, %s197
      %p204 = scmp.eq.s32.totalorder %s40, 1
      %p205 = por %p203, %p204
      %p206 = scmp.ne.s32.totalorder %s197, %s198
      %p207 = scmp.eq.s32.totalorder %s40, 0
      %p208 = por %p206, %p207
      %p209 = scmp.ne.s32.totalorder %s197, %s198
      %p210 = scmp.eq.s32.totalorder %s41, 1
      %p211 = por %p209, %p210
      %p213 = scmp.ne.s32.totalorder %s198, %s212
      %p214 = scmp.eq.s32.totalorder %s41, 0
      %p215 = por %p213, %p214
      %s217 = sadd.s32 %s216, 1
      %p220 = scmp.eq.s32.totalorder %s35, 1
      %p221 = scmp.ne.s32.totalorder %s216, %s218
      %p222 = scmp.eq.s32.totalorder %s35, 0
      %p223 = por %p221, %p222
      %p224 = scmp.ne.s32.totalorder %s216, %s218
      %p225 = scmp.eq.s32.totalorder %s40, 1
      %p226 = por %p224, %p225
      %p227 = scmp.ne.s32.totalorder %s218, %s219
      %p228 = scmp.eq.s32.totalorder %s40, 0
      %p229 = por %p227, %p228
      %p230 = scmp.ne.s32.totalorder %s218, %s219
      %p231 = scmp.eq.s32.totalorder %s41, 1
      %p232 = por %p230, %p231
      %p234 = scmp.ne.s32.totalorder %s219, %s233
      %p235 = scmp.eq.s32.totalorder %s41, 0
      %p236 = por %p234, %p235
      %s238 = sadd.s32 %s237, 1
      %p241 = scmp.eq.s32.totalorder %s35, 1
      %p242 = scmp.ne.s32.totalorder %s237, %s239
      %p243 = scmp.eq.s32.totalorder %s35, 0
      %p244 = por %p242, %p243
      %p245 = scmp.ne.s32.totalorder %s237, %s239
      %p246 = scmp.eq.s32.totalorder %s40, 1
      %p247 = por %p245, %p246
      %p248 = scmp.ne.s32.totalorder %s239, %s240
      %p249 = scmp.eq.s32.totalorder %s40, 0
      %p250 = por %p248, %p249
      %p251 = scmp.ne.s32.totalorder %s239, %s240
      %p252 = scmp.eq.s32.totalorder %s41, 1
      %p253 = por %p251, %p252
      %p255 = scmp.ne.s32.totalorder %s240, %s254
      %p256 = scmp.eq.s32.totalorder %s41, 0
      %p257 = por %p255, %p256
      %s259 = sadd.s32 %s258, 1
      %p262 = scmp.eq.s32.totalorder %s35, 1
      %p263 = scmp.ne.s32.totalorder %s258, %s260
      %p264 = scmp.eq.s32.totalorder %s35, 0
      %p265 = por %p263, %p264
      %p266 = scmp.ne.s32.totalorder %s258, %s260
      %p267 = scmp.eq.s32.totalorder %s40, 1
      %p268 = por %p266, %p267
      %p269 = scmp.ne.s32.totalorder %s260, %s261
      %p270 = scmp.eq.s32.totalorder %s40, 0
      %p271 = por %p269, %p270
      %p272 = scmp.ne.s32.totalorder %s260, %s261
      %p273 = scmp.eq.s32.totalorder %s41, 1
      %p274 = por %p272, %p273
      %p276 = scmp.ne.s32.totalorder %s261, %s275
      %p277 = scmp.eq.s32.totalorder %s41, 0
      %p278 = por %p276, %p277
      %s280 = sadd.s32 %s279, 1
      %p283 = scmp.eq.s32.totalorder %s35, 1
      %p284 = scmp.ne.s32.totalorder %s279, %s281
      %p285 = scmp.eq.s32.totalorder %s35, 0
      %p286 = por %p284, %p285
      %p287 = scmp.ne.s32.totalorder %s279, %s281
      %p288 = scmp.eq.s32.totalorder %s40, 1
      %p289 = por %p287, %p288
      %p290 = scmp.ne.s32.totalorder %s281, %s282
      %p291 = scmp.eq.s32.totalorder %s40, 0
      %p292 = por %p290, %p291
      %p293 = scmp.ne.s32.totalorder %s281, %s282
      %p294 = scmp.eq.s32.totalorder %s41, 1
      %p295 = por %p293, %p294
      %p297 = scmp.ne.s32.totalorder %s282, %s296
      %p298 = scmp.eq.s32.totalorder %s41, 0
      %p299 = por %p297, %p298
      %s301 = sadd.s32 %s300, 1
      %p304 = scmp.eq.s32.totalorder %s35, 1
      %p305 = scmp.ne.s32.totalorder %s300, %s302
      %p306 = scmp.eq.s32.totalorder %s35, 0
      %p307 = por %p305, %p306
      %p308 = scmp.ne.s32.totalorder %s300, %s302
      %p309 = scmp.eq.s32.totalorder %s40, 1
      %p310 = por %p308, %p309
      %p311 = scmp.ne.s32.totalorder %s302, %s303
      %p312 = scmp.eq.s32.totalorder %s40, 0
      %p313 = por %p311, %p312
      %p314 = scmp.ne.s32.totalorder %s302, %s303
      %p315 = scmp.eq.s32.totalorder %s41, 1
      %p316 = por %p314, %p315
      %p318 = scmp.ne.s32.totalorder %s303, %s317
      %p319 = scmp.eq.s32.totalorder %s41, 0
      %p320 = por %p318, %p319
      %s322 = sadd.s32 %s321, 1
      %p325 = scmp.eq.s32.totalorder %s35, 1
      %p326 = scmp.ne.s32.totalorder %s321, %s323
      %p327 = scmp.eq.s32.totalorder %s35, 0
      %p328 = por %p326, %p327
      %p329 = scmp.ne.s32.totalorder %s321, %s323
      %p330 = scmp.eq.s32.totalorder %s40, 1
      %p331 = por %p329, %p330
      %p332 = scmp.ne.s32.totalorder %s323, %s324
      %p333 = scmp.eq.s32.totalorder %s40, 0
      %p334 = por %p332, %p333
      %p335 = scmp.ne.s32.totalorder %s323, %s324
      %p336 = scmp.eq.s32.totalorder %s41, 1
      %p337 = por %p335, %p336
      %p339 = scmp.ne.s32.totalorder %s324, %s338
      %p340 = scmp.eq.s32.totalorder %s41, 0
      %p341 = por %p339, %p340
      %s343 = sadd.s32 %s342, 1
      %p346 = scmp.eq.s32.totalorder %s35, 1
      %p347 = scmp.ne.s32.totalorder %s342, %s344
      %p348 = scmp.eq.s32.totalorder %s35, 0
      %p349 = por %p347, %p348
      %p350 = scmp.ne.s32.totalorder %s342, %s344
      %p351 = scmp.eq.s32.totalorder %s40, 1
      %p352 = por %p350, %p351
      %p353 = scmp.ne.s32.totalorder %s344, %s345
      %p354 = scmp.eq.s32.totalorder %s40, 0
      %p355 = por %p353, %p354
      %p356 = scmp.ne.s32.totalorder %s344, %s345
      %p357 = scmp.eq.s32.totalorder %s41, 1
      %p358 = por %p356, %p357
      %p360 = scmp.ne.s32.totalorder %s345, %s359
      %p361 = scmp.eq.s32.totalorder %s41, 0
      %p362 = por %p360, %p361
      %s363 = ssub.s32 %s35, %s42
      %p364 = scmp.eq.s32.totalorder %s363, 0
      %s366 = sadd.s32 %s365, 1
      %s367 = scalar_select %p364, %s365, %s366
      %p370 = pneg %p364
      %p371 = scmp.eq.s32.totalorder %s35, 1
      %p372 = por %p370, %p371
      %p373 = scmp.ne.s32.totalorder %s365, %s368
      %p374 = scmp.eq.s32.totalorder %s35, 0
      %p375 = por %p373, %p374
      %p376 = scmp.ne.s32.totalorder %s365, %s368
      %p377 = scmp.eq.s32.totalorder %s40, 1
      %p378 = por %p376, %p377
      %p379 = scmp.ne.s32.totalorder %s368, %s369
      %p380 = scmp.eq.s32.totalorder %s40, 0
      %p381 = por %p379, %p380
      %p382 = scmp.ne.s32.totalorder %s368, %s369
      %p383 = scmp.eq.s32.totalorder %s41, 1
      %p384 = por %p382, %p383
      %p386 = scmp.ne.s32.totalorder %s369, %s385
      %p387 = scmp.eq.s32.totalorder %s41, 0
      %p388 = por %p386, %p387
      %s389 = ssub.s32 %s35, %s42
      %p390 = scmp.eq.s32.totalorder %s389, 0
      %s392 = sadd.s32 %s391, 1
      %s393 = scalar_select %p390, %s391, %s392
      %p396 = pneg %p390
      %p397 = scmp.eq.s32.totalorder %s35, 1
      %p398 = por %p396, %p397
      %p399 = scmp.ne.s32.totalorder %s391, %s394
      %p400 = scmp.eq.s32.totalorder %s35, 0
      %p401 = por %p399, %p400
      %p402 = scmp.ne.s32.totalorder %s391, %s394
      %p403 = scmp.eq.s32.totalorder %s40, 1
      %p404 = por %p402, %p403
      %p405 = scmp.ne.s32.totalorder %s394, %s395
      %p406 = scmp.eq.s32.totalorder %s40, 0
      %p407 = por %p405, %p406
      %p408 = scmp.ne.s32.totalorder %s394, %s395
      %p409 = scmp.eq.s32.totalorder %s41, 1
      %p410 = por %p408, %p409
      %p412 = scmp.ne.s32.totalorder %s395, %s411
      %p413 = scmp.eq.s32.totalorder %s41, 0
      %p414 = por %p412, %p413
      %p415 = scmp.le.s32.totalorder 1, %s35
      %p416 = scmp.lt.s32.totalorder %s35, 3
      %p417 = pnand %p415, %p416
      %p418 = pneg %p417
      // Predicated region
      $region9: #{tpu_custom_call.1} parent=5 // pred_check
        _
      $region10: #{tpu_custom_call.1} parent=5 // pred_check_branch
        %420 = sbr.rel (%p417) target = $region12
      $region11: #{tpu_custom_call.1} parent=5 // pred_region
        %s421 = ssub.s32 %s35, 1
        // Predicated region
        $region13: #{tpu_custom_call.1} parent=11 // pred_check
          %p422 = pneg %p82
        $region14: #{tpu_custom_call.1} parent=11 // pred_check_branch
          %424 = sbr.rel (%p422) target = $region16
        $region15: #{tpu_custom_call.1} parent=11 // pred_region
          _
        $region16: #{tpu_custom_call.1} parent=11 // pred_fallthru
          _
        // Predicated region
        $region17: #{tpu_custom_call.1} parent=11 // pred_check
          %p425 = pneg %p103
        $region18: #{tpu_custom_call.1} parent=11 // pred_check_branch
          %427 = sbr.rel (%p425) target = $region20
        $region19: #{tpu_custom_call.1} parent=11 // pred_region
          _
        $region20: #{tpu_custom_call.1} parent=11 // pred_fallthru
          _
        // Predicated region
        $region21: #{tpu_custom_call.1} parent=11 // pred_check
          %p428 = pneg %p124
        $region22: #{tpu_custom_call.1} parent=11 // pred_check_branch
          %430 = sbr.rel (%p428) target = $region24
        $region23: #{tpu_custom_call.1} parent=11 // pred_region
          %s432 = ssub.s32 1024, 1024
          %433 = vsyncadd [#allocation6], %s432
          %s434 = sshll.u32 [#allocation5], 4
          %s435 = int_to_ptr.vmem [resolvable:$true] %s434
          %440 = dma.hbm_to_vmem [thread:$0]  %s3, 1024, %s435, [#allocation6], 64, 64, 4
        $region24: #{tpu_custom_call.1} parent=11 // pred_fallthru
          _
        // Predicated region
        $region25: #{tpu_custom_call.1} parent=11 // pred_check
          %p441 = pneg %p145
        $region26: #{tpu_custom_call.1} parent=11 // pred_check_branch
          %443 = sbr.rel (%p441) target = $region28
        $region27: #{tpu_custom_call.1} parent=11 // pred_region
          %s445 = ssub.s32 16, 16
          %446 = vsyncadd [#allocation6], %s445
          %s448 = sshll.u32 [#allocation7], 4
          %s449 = int_to_ptr.vmem [resolvable:$true] %s448
          %451 = dma.hbm_to_vmem [thread:$0]  %s4, 16, %s449, [#allocation6]
        $region28: #{tpu_custom_call.1} parent=11 // pred_fallthru
          _
        // Predicated region
        $region29: #{tpu_custom_call.1} parent=11 // pred_check
          %p452 = pneg %p166
        $region30: #{tpu_custom_call.1} parent=11 // pred_check_branch
          %454 = sbr.rel (%p452) target = $region32
        $region31: #{tpu_custom_call.1} parent=11 // pred_region
          %s456 = ssub.s32 1024, 1024
          %457 = vsyncadd [#allocation9], %s456
          %s458 = sshll.u32 [#allocation8], 4
          %s459 = int_to_ptr.vmem [resolvable:$true] %s458
          %464 = dma.hbm_to_vmem [thread:$0]  %s5, 1024, %s459, [#allocation9], 64, 64, 4
        $region32: #{tpu_custom_call.1} parent=11 // pred_fallthru
          _
        // Predicated region
        $region33: #{tpu_custom_call.1} parent=11 // pred_check
          %p465 = pneg %p187
        $region34: #{tpu_custom_call.1} parent=11 // pred_check_branch
          %467 = sbr.rel (%p465) target = $region36
        $region35: #{tpu_custom_call.1} parent=11 // pred_region
          _
        $region36: #{tpu_custom_call.1} parent=11 // pred_fallthru
          _
        // Predicated region
        $region37: #{tpu_custom_call.1} parent=11 // pred_check
          %p468 = pneg %p208
        $region38: #{tpu_custom_call.1} parent=11 // pred_check_branch
          %470 = sbr.rel (%p468) target = $region40
        $region39: #{tpu_custom_call.1} parent=11 // pred_region
          %s472 = ssub.s32 1024, 1024
          %473 = vsyncadd [#allocation9], %s472
          %s474 = sshll.u32 [#allocation10], 4
          %s475 = int_to_ptr.vmem [resolvable:$true] %s474
          %480 = dma.hbm_to_vmem [thread:$0]  %s7, 1024, %s475, [#allocation9], 64, 64, 4
        $region40: #{tpu_custom_call.1} parent=11 // pred_fallthru
          _
        // Predicated region
        $region41: #{tpu_custom_call.1} parent=11 // pred_check
          %p481 = pneg %p229
        $region42: #{tpu_custom_call.1} parent=11 // pred_check_branch
          %483 = sbr.rel (%p481) target = $region44
        $region43: #{tpu_custom_call.1} parent=11 // pred_region
          _
        $region44: #{tpu_custom_call.1} parent=11 // pred_fallthru
          _
        // Predicated region
        $region45: #{tpu_custom_call.1} parent=11 // pred_check
          %p484 = pneg %p250
        $region46: #{tpu_custom_call.1} parent=11 // pred_check_branch
          %486 = sbr.rel (%p484) target = $region48
        $region47: #{tpu_custom_call.1} parent=11 // pred_region
          _
        $region48: #{tpu_custom_call.1} parent=11 // pred_fallthru
          _
        // Predicated region
        $region49: #{tpu_custom_call.1} parent=11 // pred_check
          %p487 = pneg %p271
        $region50: #{tpu_custom_call.1} parent=11 // pred_check_branch
          %489 = sbr.rel (%p487) target = $region52
        $region51: #{tpu_custom_call.1} parent=11 // pred_region
          _
        $region52: #{tpu_custom_call.1} parent=11 // pred_fallthru
          _
        // Predicated region
        $region53: #{tpu_custom_call.1} parent=11 // pred_check
          %p490 = pneg %p292
        $region54: #{tpu_custom_call.1} parent=11 // pred_check_branch
          %492 = sbr.rel (%p490) target = $region56
        $region55: #{tpu_custom_call.1} parent=11 // pred_region
          %s494 = ssub.s32 1024, 1024
          %495 = vsyncadd [#allocation12], %s494
          %s496 = sshll.u32 [#allocation11], 4
          %s497 = int_to_ptr.vmem [resolvable:$true] %s496
          %502 = dma.hbm_to_vmem [thread:$0]  %s11, 1024, %s497, [#allocation12], 64, 64, 4
        $region56: #{tpu_custom_call.1} parent=11 // pred_fallthru
          _
        // Predicated region
        $region57: #{tpu_custom_call.1} parent=11 // pred_check
          %p503 = pneg %p313
        $region58: #{tpu_custom_call.1} parent=11 // pred_check_branch
          %505 = sbr.rel (%p503) target = $region60
        $region59: #{tpu_custom_call.1} parent=11 // pred_region
          _
        $region60: #{tpu_custom_call.1} parent=11 // pred_fallthru
          _
        // Predicated region
        $region61: #{tpu_custom_call.1} parent=11 // pred_check
          %p506 = pneg %p334
        $region62: #{tpu_custom_call.1} parent=11 // pred_check_branch
          %508 = sbr.rel (%p506) target = $region64
        $region63: #{tpu_custom_call.1} parent=11 // pred_region
          _
        $region64: #{tpu_custom_call.1} parent=11 // pred_fallthru
          _
        // Predicated region
        $region65: #{tpu_custom_call.1} parent=11 // pred_check
          %p509 = pneg %p355
        $region66: #{tpu_custom_call.1} parent=11 // pred_check_branch
          %511 = sbr.rel (%p509) target = $region68
        $region67: #{tpu_custom_call.1} parent=11 // pred_region
          _
        $region68: #{tpu_custom_call.1} parent=11 // pred_fallthru
          _
      $region12: #{tpu_custom_call.1} parent=5 // pred_fallthru
        _
      %p512 = scmp.lt.s32.totalorder %s35, 2
      // Predicated region
      $region69: #{tpu_custom_call.1} parent=5 // pred_check
        %p513 = pneg %p512
      $region70: #{tpu_custom_call.1} parent=5 // pred_check_branch
        %515 = sbr.rel (%p513) target = $region72
      $region71: #{tpu_custom_call.1} parent=5 // pred_region
        // Predicated region
        $region73: #{tpu_custom_call.1} parent=71 // pred_check
          %p516 = pneg %p55
        $region74: #{tpu_custom_call.1} parent=71 // pred_check_branch
          %518 = sbr.rel (%p516) target = $region76
        $region75: #{tpu_custom_call.1} parent=71 // pred_region
          %s519 = sand.u32 %s45, 1
          %s520 = scalar_lea.sflag [#allocation3], %s519
          %s521 = sand.u32 %s45, 1
          %s522 = smul.addr %s521, 8
          %s523 = scalar_lea.vmem [#allocation2], %s522
          %s525 = ssub.s32 128, 128
          %526 = vsyncadd %s520, %s525
          %s527 = smul.addr %s35, 128
          %s528 = scalar_lea.hbm %s0, %s527
          %s530 = sshll.u32 %s523, 4
          %s531 = int_to_ptr.vmem [resolvable:$true] %s530
          %533 = dma.hbm_to_vmem [thread:$0]  %s528, 128, %s531, %s520
        $region76: #{tpu_custom_call.1} parent=71 // pred_fallthru
          _
      $region72: #{tpu_custom_call.1} parent=5 // pred_fallthru
        _
      %p534 = scmp.le.s32.totalorder 1, %s35
      %p535 = scmp.lt.s32.totalorder %s35, 3
      %p536 = pnand %p534, %p535
      %p537 = pneg %p536
      // Predicated region
      $region77: #{tpu_custom_call.1} parent=5 // pred_check
        _
      $region78: #{tpu_custom_call.1} parent=5 // pred_check_branch
        %539 = sbr.rel (%p536) target = $region80
      $region79: #{tpu_custom_call.1} parent=5 // pred_region
        %s540 = ssub.s32 %s35, 1
        %s541 = sand.u32 %s48, 1
        %s542 = scalar_lea.sflag [#allocation3], %s541
        %s543 = sand.u32 %s48, 1
        %s544 = smul.addr %s543, 8
        %s545 = scalar_lea.vmem [#allocation2], %s544
        // Predicated region
        $region81: #{tpu_custom_call.1} parent=79 // pred_check
          %p546 = pneg %p61
        $region82: #{tpu_custom_call.1} parent=79 // pred_check_branch
          %548 = sbr.rel (%p546) target = $region84
        $region83: #{tpu_custom_call.1} parent=79 // pred_region
          %549 = dma.done %s542, 128
        $region84: #{tpu_custom_call.1} parent=79 // pred_fallthru
          _
        // Predicated region
        $region85: #{tpu_custom_call.1} parent=79 // pred_check
          %p550 = pneg %p124
        $region86: #{tpu_custom_call.1} parent=79 // pred_check_branch
          %552 = sbr.rel (%p550) target = $region88
        $region87: #{tpu_custom_call.1} parent=79 // pred_region
          %553 = dma.done [#allocation6], 1024
        $region88: #{tpu_custom_call.1} parent=79 // pred_fallthru
          _
        // Predicated region
        $region89: #{tpu_custom_call.1} parent=79 // pred_check
          %p554 = pneg %p145
        $region90: #{tpu_custom_call.1} parent=79 // pred_check_branch
          %556 = sbr.rel (%p554) target = $region92
        $region91: #{tpu_custom_call.1} parent=79 // pred_region
          %557 = dma.done [#allocation6], 16
        $region92: #{tpu_custom_call.1} parent=79 // pred_fallthru
          _
        // Predicated region
        $region93: #{tpu_custom_call.1} parent=79 // pred_check
          %p558 = pneg %p166
        $region94: #{tpu_custom_call.1} parent=79 // pred_check_branch
          %560 = sbr.rel (%p558) target = $region96
        $region95: #{tpu_custom_call.1} parent=79 // pred_region
          %561 = dma.done [#allocation9], 1024
        $region96: #{tpu_custom_call.1} parent=79 // pred_fallthru
          _
        // Predicated region
        $region97: #{tpu_custom_call.1} parent=79 // pred_check
          %p562 = pneg %p208
        $region98: #{tpu_custom_call.1} parent=79 // pred_check_branch
          %564 = sbr.rel (%p562) target = $region100
        $region99: #{tpu_custom_call.1} parent=79 // pred_region
          %565 = dma.done [#allocation9], 1024
        $region100: #{tpu_custom_call.1} parent=79 // pred_fallthru
          _
        // Predicated region
        $region101: #{tpu_custom_call.1} parent=79 // pred_check
          %p566 = pneg %p292
        $region102: #{tpu_custom_call.1} parent=79 // pred_check_branch
          %568 = sbr.rel (%p566) target = $region104
        $region103: #{tpu_custom_call.1} parent=79 // pred_region
          %569 = dma.done [#allocation12], 1024
        $region104: #{tpu_custom_call.1} parent=79 // pred_fallthru
          _
        %s570 = sand.u32 %s48, 1
        %s571 = scalar_lea.sflag [#allocation3], %s570
        %s572 = sand.u32 %s48, 1
        %s573 = smul.addr %s572, 8
        %s574 = scalar_lea.vmem [#allocation2], %s573
        %p575 = pneg %p61
        %p576 = pneg %p58
        %p577 = pneg %p82
        %p578 = pneg %p79
        %p579 = pneg %p103
        %p580 = pneg %p100
        %p581 = pneg %p124
        %p582 = pneg %p121
        %p583 = pneg %p145
        %p584 = pneg %p142
        %p585 = pneg %p166
        %p586 = pneg %p163
        %p587 = pneg %p187
        %p588 = pneg %p184
        %p589 = pneg %p208
        %p590 = pneg %p205
        %p591 = pneg %p229
        %p592 = pneg %p226
        %p593 = pneg %p250
        %p594 = pneg %p247
        %p595 = pneg %p271
        %p596 = pneg %p268
        %p597 = pneg %p292
        %p598 = pneg %p289
        %p599 = pneg %p313
        %p600 = pneg %p310
        %p601 = pneg %p334
        %p602 = pneg %p331
        %p603 = pneg %p355
        %p604 = pneg %p352
        %p605 = pneg %p381
        %p606 = pneg %p378
        %s607 = sand.u32 %s368, 1
        %s608 = scalar_lea.sflag [#allocation4], %s607
        %s609 = sand.u32 %s368, 1
        %s610 = smul.addr %s609, 8
        %s611 = scalar_lea.vmem [#allocation13], %s610
        %p612 = pneg %p407
        %p613 = pneg %p404
        %s614 = sand.u32 %s394, 1
        %s615 = scalar_lea.sflag [#allocation15], %s614
        %s616 = sand.u32 %s394, 1
        %s617 = smul.addr %s616, 32
        %s618 = scalar_lea.vmem [#allocation14], %s617
        %v620 = vld [vmem:[%s545] sm:$0xff]
        %v621 = vld [vmem:[%s1] sm:$0x1]
        %v622 = vld [vmem:[%s2] sm:$0x1]
        %623 = vadd.xlane.f32.xlu0 %v620
        %v624 = vpop.xlane.xlu0 %623
        %v625 = vrcp.pop 128.0
        %v626 = vmul.f32 %v624, %v625
        %v627 = vsub.f32 %v620, %v626
        %v628 = vmul.f32 %v627, %v627
        %629 = vadd.xlane.f32.xlu0 %v628
        %v630 = vpop.xlane.xlu0 %629
        %v631 = vmul.f32 %v630, %v625
        %v632 = vadd.f32 %v631, 1e-05
        %v633 = vrsqrt.pop %v632
        %v634 = vmul.f32 %v627, %v633
        %v636 = vlaneseq
        %v637 = vshrl.u32 %v636, 7
        %v638 = vsub.s32 0, %v637
        %v639 = vrot.slane %v621, %v638
        %v641 = vmul.f32 %v634, %v639
        %v643 = vlaneseq
        %v644 = vshrl.u32 %v643, 7
        %v645 = vsub.s32 0, %v644
        %v646 = vrot.slane %v622, %v645
        %v648 = vadd.f32 %v641, %v646
        %v649 = vpack.c.bf16 %v648, %v648
        %v650 = vld [vmem:[#allocation5] sm:$0xf]
        %v651 = vld [vmem:[#allocation5 + $0x4] sm:$0xf]
        %v652 = vld [vmem:[#allocation5 + $0x8] sm:$0xf]
        %v653 = vld [vmem:[#allocation5 + $0xc] sm:$0xf]
        %v654 = vld [vmem:[#allocation5 + $0x10] sm:$0xf]
        %v655 = vld [vmem:[#allocation5 + $0x14] sm:$0xf]
        %v656 = vld [vmem:[#allocation5 + $0x18] sm:$0xf]
        %v657 = vld [vmem:[#allocation5 + $0x1c] sm:$0xf]
        %v658 = vld [vmem:[#allocation5 + $0x20] sm:$0xf]
        %v659 = vld [vmem:[#allocation5 + $0x24] sm:$0xf]
        %v660 = vld [vmem:[#allocation5 + $0x28] sm:$0xf]
        %v661 = vld [vmem:[#allocation5 + $0x2c] sm:$0xf]
        %v662 = vld [vmem:[#allocation5 + $0x30] sm:$0xf]
        %v663 = vld [vmem:[#allocation5 + $0x34] sm:$0xf]
        %v664 = vld [vmem:[#allocation5 + $0x38] sm:$0xf]
        %v665 = vld [vmem:[#allocation5 + $0x3c] sm:$0xf]
        %v666 = vld [vmem:[#allocation7] sm:$0x1]
        %v668 = vlaneseq
        %v669 = vshrl.u32 %v668, 7
        %v670 = vsub.s32 0, %v669
        %v671 = vrot.slane %v666, %v670
        %v689 = vunpack.c.l.b16 %v650
        %v690 = vunpack.c.l.b16 %v651
        %v691 = vunpack.c.l.b16 %v652
        %v692 = vunpack.c.l.b16 %v653
        %v693 = vunpack.c.l.b16 %v654
        %v694 = vunpack.c.l.b16 %v655
        %v695 = vunpack.c.l.b16 %v656
        %v696 = vunpack.c.l.b16 %v657
        %v697 = vunpack.c.l.b16 %v658
        %v698 = vunpack.c.l.b16 %v659
        %v699 = vunpack.c.l.b16 %v660
        %v700 = vunpack.c.l.b16 %v661
        %v701 = vunpack.c.l.b16 %v662
        %v702 = vunpack.c.l.b16 %v663
        %v703 = vunpack.c.l.b16 %v664
        %v704 = vunpack.c.l.b16 %v665
        %v705 = vpack.c.b16 %v690, %v689
        %v706 = vpack.c.b16 %v692, %v691
        %v707 = vpack.c.b16 %v694, %v693
        %v708 = vpack.c.b16 %v696, %v695
        %v709 = vpack.c.b16 %v698, %v697
        %v710 = vpack.c.b16 %v700, %v699
        %v711 = vpack.c.b16 %v702, %v701
        %v712 = vpack.c.b16 %v704, %v703
        %721 = vmatprep.subr.bf16.mxu0 0
        %722 = vmatpush1.bf16.msra.mxu0 %v705
        %723 = vmatprep.subr.bf16.mxu0 0
        %724 = vmatpush1.bf16.msra.mxu0 %v706
        %725 = vmatprep.subr.bf16.mxu0 0
        %726 = vmatpush1.bf16.msra.mxu0 %v707
        %727 = vmatprep.subr.bf16.mxu0 0
        %728 = vmatpush1.bf16.msra.mxu0 %v708
        %729 = vmatprep.subr.bf16.mxu0 0
        %730 = vmatpush1.bf16.msra.mxu0 %v709
        %731 = vmatprep.subr.bf16.mxu0 0
        %732 = vmatpush1.bf16.msra.mxu0 %v710
        %733 = vmatprep.subr.bf16.mxu0 0
        %734 = vmatpush1.bf16.msra.mxu0 %v711
        %735 = vmatprep.subr.bf16.mxu0 0
        %736 = vmatpush1.bf16.msra.mxu0 %v712
        %737 = vmatprep.subr.bf16.mxu0 0
        %738 = vmatpush1.bf16.msra.mxu0 0
        %739 = vmatprep.subr.bf16.mxu0 0
        %740 = vmatpush1.bf16.msra.mxu0 0
        %741 = vmatprep.subr.bf16.mxu0 0
        %742 = vmatpush1.bf16.msra.mxu0 0
        %743 = vmatprep.subr.bf16.mxu0 0
        %744 = vmatpush1.bf16.msra.mxu0 0
        %745 = vmatprep.subr.bf16.mxu0 0
        %746 = vmatpush1.bf16.msra.mxu0 0
        %747 = vmatprep.subr.bf16.mxu0 0
        %748 = vmatpush1.bf16.msra.mxu0 0
        %749 = vmatprep.subr.bf16.mxu0 0
        %750 = vmatpush1.bf16.msra.mxu0 0
        %751 = vmatprep.subr.bf16.mxu0 0
        %752 = vmatpush1.bf16.msra.mxu0 0
        %753 = vmatprep.mubr.bf16.mxu0 0
        %754 = vmatmul.mubr.bf16.gmra.mrb[0].mxu0 %v649
        %v755 = vpop.f32.mrb[0].mxu0
        %v756 = vadd.f32 %v671, %v755
        %v757 = vpop.f32.mrb[0].mxu0
        %v758 = vpop.f32.mrb[0].mxu0
        %v759 = vpop.f32.mrb[0].mxu0
        %760 = vdwg.mxu0
        %v761 = vld [vmem:[#allocation8] sm:$0xf]
        %v762 = vld [vmem:[#allocation8 + $0x4] sm:$0xf]
        %v763 = vld [vmem:[#allocation8 + $0x8] sm:$0xf]
        %v764 = vld [vmem:[#allocation8 + $0xc] sm:$0xf]
        %v765 = vld [vmem:[#allocation8 + $0x10] sm:$0xf]
        %v766 = vld [vmem:[#allocation8 + $0x14] sm:$0xf]
        %v767 = vld [vmem:[#allocation8 + $0x18] sm:$0xf]
        %v768 = vld [vmem:[#allocation8 + $0x1c] sm:$0xf]
        %v769 = vld [vmem:[#allocation8 + $0x20] sm:$0xf]
        %v770 = vld [vmem:[#allocation8 + $0x24] sm:$0xf]
        %v771 = vld [vmem:[#allocation8 + $0x28] sm:$0xf]
        %v772 = vld [vmem:[#allocation8 + $0x2c] sm:$0xf]
        %v773 = vld [vmem:[#allocation8 + $0x30] sm:$0xf]
        %v774 = vld [vmem:[#allocation8 + $0x34] sm:$0xf]
        %v775 = vld [vmem:[#allocation8 + $0x38] sm:$0xf]
        %v776 = vld [vmem:[#allocation8 + $0x3c] sm:$0xf]
        %v777 = vld [vmem:[%s6] sm:$0x1]
        %v779 = vlaneseq
        %v780 = vshrl.u32 %v779, 7
        %v781 = vsub.s32 0, %v780
        %v782 = vrot.slane %v777, %v781
        %v800 = vunpack.c.l.b16 %v761
        %v801 = vunpack.c.l.b16 %v762
        %v802 = vunpack.c.l.b16 %v763
        %v803 = vunpack.c.l.b16 %v764
        %v804 = vunpack.c.l.b16 %v765
        %v805 = vunpack.c.l.b16 %v766
        %v806 = vunpack.c.l.b16 %v767
        %v807 = vunpack.c.l.b16 %v768
        %v808 = vunpack.c.l.b16 %v769
        %v809 = vunpack.c.l.b16 %v770
        %v810 = vunpack.c.l.b16 %v771
        %v811 = vunpack.c.l.b16 %v772
        %v812 = vunpack.c.l.b16 %v773
        %v813 = vunpack.c.l.b16 %v774
        %v814 = vunpack.c.l.b16 %v775
        %v815 = vunpack.c.l.b16 %v776
        %v816 = vpack.c.b16 %v801, %v800
        %v817 = vpack.c.b16 %v803, %v802
        %v818 = vpack.c.b16 %v805, %v804
        %v819 = vpack.c.b16 %v807, %v806
        %v820 = vpack.c.b16 %v809, %v808
        %v821 = vpack.c.b16 %v811, %v810
        %v822 = vpack.c.b16 %v813, %v812
        %v823 = vpack.c.b16 %v815, %v814
        %832 = vmatprep.subr.bf16.mxu0 0
        %833 = vmatpush1.bf16.msra.mxu0 %v816
        %834 = vmatprep.subr.bf16.mxu0 0
        %835 = vmatpush1.bf16.msra.mxu0 %v817
        %836 = vmatprep.subr.bf16.mxu0 0
        %837 = vmatpush1.bf16.msra.mxu0 %v818
        %838 = vmatprep.subr.bf16.mxu0 0
        %839 = vmatpush1.bf16.msra.mxu0 %v819
        %840 = vmatprep.subr.bf16.mxu0 0
        %841 = vmatpush1.bf16.msra.mxu0 %v820
        %842 = vmatprep.subr.bf16.mxu0 0
        %843 = vmatpush1.bf16.msra.mxu0 %v821
        %844 = vmatprep.subr.bf16.mxu0 0
        %845 = vmatpush1.bf16.msra.mxu0 %v822
        %846 = vmatprep.subr.bf16.mxu0 0
        %847 = vmatpush1.bf16.msra.mxu0 %v823
        %848 = vmatprep.subr.bf16.mxu0 0
        %849 = vmatpush1.bf16.msra.mxu0 0
        %850 = vmatprep.subr.bf16.mxu0 0
        %851 = vmatpush1.bf16.msra.mxu0 0
        %852 = vmatprep.subr.bf16.mxu0 0
        %853 = vmatpush1.bf16.msra.mxu0 0
        %854 = vmatprep.subr.bf16.mxu0 0
        %855 = vmatpush1.bf16.msra.mxu0 0
        %856 = vmatprep.subr.bf16.mxu0 0
        %857 = vmatpush1.bf16.msra.mxu0 0
        %858 = vmatprep.subr.bf16.mxu0 0
        %859 = vmatpush1.bf16.msra.mxu0 0
        %860 = vmatprep.subr.bf16.mxu0 0
        %861 = vmatpush1.bf16.msra.mxu0 0
        %862 = vmatprep.subr.bf16.mxu0 0
        %863 = vmatpush1.bf16.msra.mxu0 0
        %864 = vmatprep.mubr.bf16.mxu0 0
        %865 = vmatmul.mubr.bf16.gmra.mrb[0].mxu0 %v649
        %v866 = vpop.f32.mrb[0].mxu0
        %v867 = vadd.f32 %v782, %v866
        %v868 = vpop.f32.mrb[0].mxu0
        %v869 = vpop.f32.mrb[0].mxu0
        %v870 = vpop.f32.mrb[0].mxu0
        %871 = vdwg.mxu0
        %v872 = vld [vmem:[#allocation10] sm:$0xf]
        %v873 = vld [vmem:[#allocation10 + $0x4] sm:$0xf]
        %v874 = vld [vmem:[#allocation10 + $0x8] sm:$0xf]
        %v875 = vld [vmem:[#allocation10 + $0xc] sm:$0xf]
        %v876 = vld [vmem:[#allocation10 + $0x10] sm:$0xf]
        %v877 = vld [vmem:[#allocation10 + $0x14] sm:$0xf]
        %v878 = vld [vmem:[#allocation10 + $0x18] sm:$0xf]
        %v879 = vld [vmem:[#allocation10 + $0x1c] sm:$0xf]
        %v880 = vld [vmem:[#allocation10 + $0x20] sm:$0xf]
        %v881 = vld [vmem:[#allocation10 + $0x24] sm:$0xf]
        %v882 = vld [vmem:[#allocation10 + $0x28] sm:$0xf]
        %v883 = vld [vmem:[#allocation10 + $0x2c] sm:$0xf]
        %v884 = vld [vmem:[#allocation10 + $0x30] sm:$0xf]
        %v885 = vld [vmem:[#allocation10 + $0x34] sm:$0xf]
        %v886 = vld [vmem:[#allocation10 + $0x38] sm:$0xf]
        %v887 = vld [vmem:[#allocation10 + $0x3c] sm:$0xf]
        %v888 = vld [vmem:[%s8] sm:$0x1]
        %v890 = vlaneseq
        %v891 = vshrl.u32 %v890, 7
        %v892 = vsub.s32 0, %v891
        %v893 = vrot.slane %v888, %v892
        %v911 = vunpack.c.l.b16 %v872
        %v912 = vunpack.c.l.b16 %v873
        %v913 = vunpack.c.l.b16 %v874
        %v914 = vunpack.c.l.b16 %v875
        %v915 = vunpack.c.l.b16 %v876
        %v916 = vunpack.c.l.b16 %v877
        %v917 = vunpack.c.l.b16 %v878
        %v918 = vunpack.c.l.b16 %v879
        %v919 = vunpack.c.l.b16 %v880
        %v920 = vunpack.c.l.b16 %v881
        %v921 = vunpack.c.l.b16 %v882
        %v922 = vunpack.c.l.b16 %v883
        %v923 = vunpack.c.l.b16 %v884
        %v924 = vunpack.c.l.b16 %v885
        %v925 = vunpack.c.l.b16 %v886
        %v926 = vunpack.c.l.b16 %v887
        %v927 = vpack.c.b16 %v912, %v911
        %v928 = vpack.c.b16 %v914, %v913
        %v929 = vpack.c.b16 %v916, %v915
        %v930 = vpack.c.b16 %v918, %v917
        %v931 = vpack.c.b16 %v920, %v919
        %v932 = vpack.c.b16 %v922, %v921
        %v933 = vpack.c.b16 %v924, %v923
        %v934 = vpack.c.b16 %v926, %v925
        %943 = vmatprep.subr.bf16.mxu0 0
        %944 = vmatpush1.bf16.msra.mxu0 %v927
        %945 = vmatprep.subr.bf16.mxu0 0
        %946 = vmatpush1.bf16.msra.mxu0 %v928
        %947 = vmatprep.subr.bf16.mxu0 0
        %948 = vmatpush1.bf16.msra.mxu0 %v929
        %949 = vmatprep.subr.bf16.mxu0 0
        %950 = vmatpush1.bf16.msra.mxu0 %v930
        %951 = vmatprep.subr.bf16.mxu0 0
        %952 = vmatpush1.bf16.msra.mxu0 %v931
        %953 = vmatprep.subr.bf16.mxu0 0
        %954 = vmatpush1.bf16.msra.mxu0 %v932
        %955 = vmatprep.subr.bf16.mxu0 0
        %956 = vmatpush1.bf16.msra.mxu0 %v933
        %957 = vmatprep.subr.bf16.mxu0 0
        %958 = vmatpush1.bf16.msra.mxu0 %v934
        %959 = vmatprep.subr.bf16.mxu0 0
        %960 = vmatpush1.bf16.msra.mxu0 0
        %961 = vmatprep.subr.bf16.mxu0 0
        %962 = vmatpush1.bf16.msra.mxu0 0
        %963 = vmatprep.subr.bf16.mxu0 0
        %964 = vmatpush1.bf16.msra.mxu0 0
        %965 = vmatprep.subr.bf16.mxu0 0
        %966 = vmatpush1.bf16.msra.mxu0 0
        %967 = vmatprep.subr.bf16.mxu0 0
        %968 = vmatpush1.bf16.msra.mxu0 0
        %969 = vmatprep.subr.bf16.mxu0 0
        %970 = vmatpush1.bf16.msra.mxu0 0
        %971 = vmatprep.subr.bf16.mxu0 0
        %972 = vmatpush1.bf16.msra.mxu0 0
        %973 = vmatprep.subr.bf16.mxu0 0
        %974 = vmatpush1.bf16.msra.mxu0 0
        %975 = vmatprep.mubr.bf16.mxu0 0
        %976 = vmatmul.mubr.bf16.gmra.mrb[0].mxu0 %v649
        %v977 = vpop.f32.mrb[0].mxu0
        %v978 = vadd.f32 %v893, %v977
        %v979 = vpop.f32.mrb[0].mxu0
        %v980 = vpop.f32.mrb[0].mxu0
        %v981 = vpop.f32.mrb[0].mxu0
        %982 = vdwg.mxu0
        %v983 = vld [vmem:[%s9] sm:$0xff]
        %v984 = vld [vmem:[%s10] sm:$0xff]
        %v985 = vlaneseq
        %v986 = vand.u32 %v985, 127
        %vm987 = vcmp.lt.s32.totalorder %v986, 0
        %v988 = vsub.s32 0, %v986
        %v989 = vsel %vm987, %v988, %v986
        %v990 = vshrl.u32 %v989, 1
        %v991 = vand.u32 %v989, 1
        %v992 = vsub.s32 0, %v991
        %v993 = vsel %vm987, %v992, %v991
        %vm994 = vcmp.ne.s32.totalorder %v993, 0
        %vm995 = vcmp.lt.s32.totalorder %v993, 0
        %vm996 = vmand %vm995, %vm994
        %v997 = vadd.s32 %v993, 2
        %v998 = vsel %vm996, %v997, %v993
        %vm999 = vcmp.eq.s32.totalorder %v998, 0
        %1000 = vrot.lane.b32.xlu0 %v756, 127
        %v1001 = vpop.permute.xlu0 %1000
        %1002 = vrot.lane.b32.xlu0 %v756, 1
        %v1003 = vpop.permute.xlu0 %1002
        %v1004 = vsel %vm999, %v1001, %v1003
        %v1005 = vmul.f32 %v756, %v983
        %v1006 = vmul.f32 %v1004, %v984
        %v1007 = vadd.f32 %v1005, %v1006
        %v1008 = vmul.f32 %v1007, 0.17677669
        %v1009 = vpack.c.bf16 %v1008, %v1008
        %1010 = vrot.lane.b32.xlu0 %v867, 127
        %v1011 = vpop.permute.xlu0 %1010
        %1012 = vrot.lane.b32.xlu0 %v867, 1
        %v1013 = vpop.permute.xlu0 %1012
        %v1014 = vsel %vm999, %v1011, %v1013
        %v1015 = vmul.f32 %v867, %v983
        %v1016 = vmul.f32 %v1014, %v984
        %v1017 = vadd.f32 %v1015, %v1016
        %v1018 = vpack.c.bf16 %v1017, %v1017
        %v1019 = vpack.c.bf16 %v978, %v978
        %vm1020 = vcmask 261120
        %v1022 = vsel %vm1020, %v1009, 0
        %v1025 = vsel %vm1020, %v1018, 0
        %1027 = vmatprep.subr.bf16.mxu0 0
        %1028 = vmatpush1.bf16.xpose.msra.mxu0 %v1025
        %1029 = vmatprep.subr.bf16.mxu0 0
        %1030 = vmatpush1.bf16.xpose.msra.mxu0 0
        %1031 = vmatprep.subr.bf16.mxu0 0
        %1032 = vmatpush1.bf16.xpose.msra.mxu0 0
        %1033 = vmatprep.subr.bf16.mxu0 0
        %1034 = vmatpush1.bf16.xpose.msra.mxu0 0
        %1035 = vmatprep.subr.bf16.mxu0 0
        %1036 = vmatpush1.bf16.xpose.msra.mxu0 0
        %1037 = vmatprep.subr.bf16.mxu0 0
        %1038 = vmatpush1.bf16.xpose.msra.mxu0 0
        %1039 = vmatprep.subr.bf16.mxu0 0
        %1040 = vmatpush1.bf16.xpose.msra.mxu0 0
        %1041 = vmatprep.subr.bf16.mxu0 0
        %1042 = vmatpush1.bf16.xpose.msra.mxu0 0
        %1043 = vmatprep.subr.bf16.mxu0 0
        %1044 = vmatpush1.bf16.xpose.msra.mxu0 0
        %1045 = vmatprep.subr.bf16.mxu0 0
        %1046 = vmatpush1.bf16.xpose.msra.mxu0 0
        %1047 = vmatprep.subr.bf16.mxu0 0
        %1048 = vmatpush1.bf16.xpose.msra.mxu0 0
        %1049 = vmatprep.subr.bf16.mxu0 0
        %1050 = vmatpush1.bf16.xpose.msra.mxu0 0
        %1051 = vmatprep.subr.bf16.mxu0 0
        %1052 = vmatpush1.bf16.xpose.msra.mxu0 0
        %1053 = vmatprep.subr.bf16.mxu0 0
        %1054 = vmatpush1.bf16.xpose.msra.mxu0 0
        %1055 = vmatprep.subr.bf16.mxu0 0
        %1056 = vmatpush1.bf16.xpose.msra.mxu0 0
        %1057 = vmatprep.subr.bf16.mxu0 0
        %1058 = vmatpush1.bf16.xpose.msra.mxu0 0
        %1059 = vmatprep.mubr.bf16.mxu0 0
        %1060 = vmatmul.mubr.bf16.gmra.mrb[0].mxu0 %v1022
        %v1061 = vpop.f32.mrb[0].mxu0
        %v1062 = vadd.f32 0.0, %v1061
        %v1063 = vpop.f32.mrb[0].mxu0
        %v1064 = vpop.f32.mrb[0].mxu0
        %v1065 = vpop.f32.mrb[0].mxu0
        %1066 = vdwg.mxu0
        %vm1067 = vcmask 64512
        %v1068 = vsel %vm1067, %v1062, -inf
        %1069 = vmax.xlane.f32.xlu0 %v1068
        %v1070 = vpop.xlane.xlu0 %1069
        %v1071 = vsub.f32 %v1062, %v1070
        %v1072 = vmul.f32 %v1071, 1.442695
        %v1073 = vpow.pop %v1072
        %v1074 = vsel %vm1067, %v1073, 0.0
        %1075 = vadd.xlane.f32.xlu0 %v1074
        %v1076 = vpop.xlane.xlu0 %1075
        %v1077 = vrcp.pop %v1076
        %v1078 = vmul.f32 %v1073, %v1077
        %1079 = vst.msk [vmem:[%s618] sm:$0xff] %vm1067, %v1078
        %v1080 = vpack.c.bf16 %v1078, %v1078
        %v1082 = vsel %vm1067, %v1080, 0
        %vm1084 = vcmask 1043456
        %v1086 = vsel %vm1084, %v1019, 0
        %1088 = vmatprep.subr.bf16.mxu0 0
        %1089 = vmatpush1.bf16.msra.mxu0 %v1086
        %1090 = vmatprep.subr.bf16.mxu0 0
        %1091 = vmatpush1.bf16.msra.mxu0 0
        %1092 = vmatprep.subr.bf16.mxu0 0
        %1093 = vmatpush1.bf16.msra.mxu0 0
        %1094 = vmatprep.subr.bf16.mxu0 0
        %1095 = vmatpush1.bf16.msra.mxu0 0
        %1096 = vmatprep.subr.bf16.mxu0 0
        %1097 = vmatpush1.bf16.msra.mxu0 0
        %1098 = vmatprep.subr.bf16.mxu0 0
        %1099 = vmatpush1.bf16.msra.mxu0 0
        %1100 = vmatprep.subr.bf16.mxu0 0
        %1101 = vmatpush1.bf16.msra.mxu0 0
        %1102 = vmatprep.subr.bf16.mxu0 0
        %1103 = vmatpush1.bf16.msra.mxu0 0
        %1104 = vmatprep.subr.bf16.mxu0 0
        %1105 = vmatpush1.bf16.msra.mxu0 0
        %1106 = vmatprep.subr.bf16.mxu0 0
        %1107 = vmatpush1.bf16.msra.mxu0 0
        %1108 = vmatprep.subr.bf16.mxu0 0
        %1109 = vmatpush1.bf16.msra.mxu0 0
        %1110 = vmatprep.subr.bf16.mxu0 0
        %1111 = vmatpush1.bf16.msra.mxu0 0
        %1112 = vmatprep.subr.bf16.mxu0 0
        %1113 = vmatpush1.bf16.msra.mxu0 0
        %1114 = vmatprep.subr.bf16.mxu0 0
        %1115 = vmatpush1.bf16.msra.mxu0 0
        %1116 = vmatprep.subr.bf16.mxu0 0
        %1117 = vmatpush1.bf16.msra.mxu0 0
        %1118 = vmatprep.subr.bf16.mxu0 0
        %1119 = vmatpush1.bf16.msra.mxu0 0
        %1120 = vmatprep.mubr.bf16.mxu0 0
        %1121 = vmatmul.mubr.bf16.gmra.mrb[0].mxu0 %v1082
        %v1122 = vpop.f32.mrb[0].mxu0
        %v1123 = vadd.f32 0.0, %v1122
        %v1124 = vpop.f32.mrb[0].mxu0
        %v1125 = vpop.f32.mrb[0].mxu0
        %v1126 = vpop.f32.mrb[0].mxu0
        %1127 = vdwg.mxu0
        %1129 = vrot.lane.b32.xlu0 %v1009, 96
        %v1130 = vpop.permute.xlu0 %1129
        %1132 = vrot.lane.b32.xlu0 %v1018, 96
        %v1133 = vpop.permute.xlu0 %1132
        %v1135 = vsel %vm1020, %v1130, 0
        %v1138 = vsel %vm1020, %v1133, 0
        %1140 = vmatprep.subr.bf16.mxu0 0
        %1141 = vmatpush1.bf16.xpose.msra.mxu0 %v1138
        %1142 = vmatprep.subr.bf16.mxu0 0
        %1143 = vmatpush1.bf16.xpose.msra.mxu0 0
        %1144 = vmatprep.subr.bf16.mxu0 0
        %1145 = vmatpush1.bf16.xpose.msra.mxu0 0
        %1146 = vmatprep.subr.bf16.mxu0 0
        %1147 = vmatpush1.bf16.xpose.msra.mxu0 0
        %1148 = vmatprep.subr.bf16.mxu0 0
        %1149 = vmatpush1.bf16.xpose.msra.mxu0 0
        %1150 = vmatprep.subr.bf16.mxu0 0
        %1151 = vmatpush1.bf16.xpose.msra.mxu0 0
        %1152 = vmatprep.subr.bf16.mxu0 0
        %1153 = vmatpush1.bf16.xpose.msra.mxu0 0
        %1154 = vmatprep.subr.bf16.mxu0 0
        %1155 = vmatpush1.bf16.xpose.msra.mxu0 0
        %1156 = vmatprep.subr.bf16.mxu0 0
        %1157 = vmatpush1.bf16.xpose.msra.mxu0 0
        %1158 = vmatprep.subr.bf16.mxu0 0
        %1159 = vmatpush1.bf16.xpose.msra.mxu0 0
        %1160 = vmatprep.subr.bf16.mxu0 0
        %1161 = vmatpush1.bf16.xpose.msra.mxu0 0
        %1162 = vmatprep.subr.bf16.mxu0 0
        %1163 = vmatpush1.bf16.xpose.msra.mxu0 0
        %1164 = vmatprep.subr.bf16.mxu0 0
        %1165 = vmatpush1.bf16.xpose.msra.mxu0 0
        %1166 = vmatprep.subr.bf16.mxu0 0
        %1167 = vmatpush1.bf16.xpose.msra.mxu0 0
        %1168 = vmatprep.subr.bf16.mxu0 0
        %1169 = vmatpush1.bf16.xpose.msra.mxu0 0
        %1170 = vmatprep.subr.bf16.mxu0 0
        %1171 = vmatpush1.bf16.xpose.msra.mxu0 0
        %1172 = vmatprep.mubr.bf16.mxu0 0
        %1173 = vmatmul.mubr.bf16.gmra.mrb[0].mxu0 %v1135
        %v1174 = vpop.f32.mrb[0].mxu0
        %v1175 = vadd.f32 0.0, %v1174
        %v1176 = vpop.f32.mrb[0].mxu0
        %v1177 = vpop.f32.mrb[0].mxu0
        %v1178 = vpop.f32.mrb[0].mxu0
        %1179 = vdwg.mxu0
        %v1180 = vsel %vm1067, %v1175, -inf
        %1181 = vmax.xlane.f32.xlu0 %v1180
        %v1182 = vpop.xlane.xlu0 %1181
        %v1183 = vsub.f32 %v1175, %v1182
        %v1184 = vmul.f32 %v1183, 1.442695
        %v1185 = vpow.pop %v1184
        %v1186 = vsel %vm1067, %v1185, 0.0
        %1187 = vadd.xlane.f32.xlu0 %v1186
        %v1188 = vpop.xlane.xlu0 %1187
        %v1189 = vrcp.pop %v1188
        %v1190 = vmul.f32 %v1185, %v1189
        %s1191 = scalar_lea.vmem %s618, 8 [#allocation14]
        %1192 = vst.msk [vmem:[%s1191] sm:$0xff] %vm1067, %v1190
        %v1193 = vpack.c.bf16 %v1190, %v1190
        %1195 = vrot.lane.b32.xlu0 %v1019, 96
        %v1196 = vpop.permute.xlu0 %1195
        %v1198 = vsel %vm1067, %v1193, 0
        %v1201 = vsel %vm1084, %v1196, 0
        %1203 = vmatprep.subr.bf16.mxu0 0
        %1204 = vmatpush1.bf16.msra.mxu0 %v1201
        %1205 = vmatprep.subr.bf16.mxu0 0
        %1206 = vmatpush1.bf16.msra.mxu0 0
        %1207 = vmatprep.subr.bf16.mxu0 0
        %1208 = vmatpush1.bf16.msra.mxu0 0
        %1209 = vmatprep.subr.bf16.mxu0 0
        %1210 = vmatpush1.bf16.msra.mxu0 0
        %1211 = vmatprep.subr.bf16.mxu0 0
        %1212 = vmatpush1.bf16.msra.mxu0 0
        %1213 = vmatprep.subr.bf16.mxu0 0
        %1214 = vmatpush1.bf16.msra.mxu0 0
        %1215 = vmatprep.subr.bf16.mxu0 0
        %1216 = vmatpush1.bf16.msra.mxu0 0
        %1217 = vmatprep.subr.bf16.mxu0 0
        %1218 = vmatpush1.bf16.msra.mxu0 0
        %1219 = vmatprep.subr.bf16.mxu0 0
        %1220 = vmatpush1.bf16.msra.mxu0 0
        %1221 = vmatprep.subr.bf16.mxu0 0
        %1222 = vmatpush1.bf16.msra.mxu0 0
        %1223 = vmatprep.subr.bf16.mxu0 0
        %1224 = vmatpush1.bf16.msra.mxu0 0
        %1225 = vmatprep.subr.bf16.mxu0 0
        %1226 = vmatpush1.bf16.msra.mxu0 0
        %1227 = vmatprep.subr.bf16.mxu0 0
        %1228 = vmatpush1.bf16.msra.mxu0 0
        %1229 = vmatprep.subr.bf16.mxu0 0
        %1230 = vmatpush1.bf16.msra.mxu0 0
        %1231 = vmatprep.subr.bf16.mxu0 0
        %1232 = vmatpush1.bf16.msra.mxu0 0
        %1233 = vmatprep.subr.bf16.mxu0 0
        %1234 = vmatpush1.bf16.msra.mxu0 0
        %1235 = vmatprep.mubr.bf16.mxu0 0
        %1236 = vmatmul.mubr.bf16.gmra.mrb[0].mxu0 %v1198
        %v1237 = vpop.f32.mrb[0].mxu0
        %v1238 = vadd.f32 0.0, %v1237
        %v1239 = vpop.f32.mrb[0].mxu0
        %v1240 = vpop.f32.mrb[0].mxu0
        %v1241 = vpop.f32.mrb[0].mxu0
        %1242 = vdwg.mxu0
        %1243 = vrot.lane.b32.xlu0 %v1009, 64
        %v1244 = vpop.permute.xlu0 %1243
        %1245 = vrot.lane.b32.xlu0 %v1018, 64
        %v1246 = vpop.permute.xlu0 %1245
        %v1248 = vsel %vm1020, %v1244, 0
        %v1251 = vsel %vm1020, %v1246, 0
        %1253 = vmatprep.subr.bf16.mxu0 0
        %1254 = vmatpush1.bf16.xpose.msra.mxu0 %v1251
        %1255 = vmatprep.subr.bf16.mxu0 0
        %1256 = vmatpush1.bf16.xpose.msra.mxu0 0
        %1257 = vmatprep.subr.bf16.mxu0 0
        %1258 = vmatpush1.bf16.xpose.msra.mxu0 0
        %1259 = vmatprep.subr.bf16.mxu0 0
        %1260 = vmatpush1.bf16.xpose.msra.mxu0 0
        %1261 = vmatprep.subr.bf16.mxu0 0
        %1262 = vmatpush1.bf16.xpose.msra.mxu0 0
        %1263 = vmatprep.subr.bf16.mxu0 0
        %1264 = vmatpush1.bf16.xpose.msra.mxu0 0
        %1265 = vmatprep.subr.bf16.mxu0 0
        %1266 = vmatpush1.bf16.xpose.msra.mxu0 0
        %1267 = vmatprep.subr.bf16.mxu0 0
        %1268 = vmatpush1.bf16.xpose.msra.mxu0 0
        %1269 = vmatprep.subr.bf16.mxu0 0
        %1270 = vmatpush1.bf16.xpose.msra.mxu0 0
        %1271 = vmatprep.subr.bf16.mxu0 0
        %1272 = vmatpush1.bf16.xpose.msra.mxu0 0
        %1273 = vmatprep.subr.bf16.mxu0 0
        %1274 = vmatpush1.bf16.xpose.msra.mxu0 0
        %1275 = vmatprep.subr.bf16.mxu0 0
        %1276 = vmatpush1.bf16.xpose.msra.mxu0 0
        %1277 = vmatprep.subr.bf16.mxu0 0
        %1278 = vmatpush1.bf16.xpose.msra.mxu0 0
        %1279 = vmatprep.subr.bf16.mxu0 0
        %1280 = vmatpush1.bf16.xpose.msra.mxu0 0
        %1281 = vmatprep.subr.bf16.mxu0 0
        %1282 = vmatpush1.bf16.xpose.msra.mxu0 0
        %1283 = vmatprep.subr.bf16.mxu0 0
        %1284 = vmatpush1.bf16.xpose.msra.mxu0 0
        %1285 = vmatprep.mubr.bf16.mxu0 0
        %1286 = vmatmul.mubr.bf16.gmra.mrb[0].mxu0 %v1248
        %v1287 = vpop.f32.mrb[0].mxu0
        %v1288 = vadd.f32 0.0, %v1287
        %v1289 = vpop.f32.mrb[0].mxu0
        %v1290 = vpop.f32.mrb[0].mxu0
        %v1291 = vpop.f32.mrb[0].mxu0
        %1292 = vdwg.mxu0
        %v1293 = vsel %vm1067, %v1288, -inf
        %1294 = vmax.xlane.f32.xlu0 %v1293
        %v1295 = vpop.xlane.xlu0 %1294
        %v1296 = vsub.f32 %v1288, %v1295
        %v1297 = vmul.f32 %v1296, 1.442695
        %v1298 = vpow.pop %v1297
        %v1299 = vsel %vm1067, %v1298, 0.0
        %1300 = vadd.xlane.f32.xlu0 %v1299
        %v1301 = vpop.xlane.xlu0 %1300
        %v1302 = vrcp.pop %v1301
        %v1303 = vmul.f32 %v1298, %v1302
        %s1304 = scalar_lea.vmem %s618, 16 [#allocation14]
        %1305 = vst.msk [vmem:[%s1304] sm:$0xff] %vm1067, %v1303
        %v1306 = vpack.c.bf16 %v1303, %v1303
        %1307 = vrot.lane.b32.xlu0 %v1019, 64
        %v1308 = vpop.permute.xlu0 %1307
        %v1310 = vsel %vm1067, %v1306, 0
        %v1313 = vsel %vm1084, %v1308, 0
        %1315 = vmatprep.subr.bf16.mxu0 0
        %1316 = vmatpush1.bf16.msra.mxu0 %v1313
        %1317 = vmatprep.subr.bf16.mxu0 0
        %1318 = vmatpush1.bf16.msra.mxu0 0
        %1319 = vmatprep.subr.bf16.mxu0 0
        %1320 = vmatpush1.bf16.msra.mxu0 0
        %1321 = vmatprep.subr.bf16.mxu0 0
        %1322 = vmatpush1.bf16.msra.mxu0 0
        %1323 = vmatprep.subr.bf16.mxu0 0
        %1324 = vmatpush1.bf16.msra.mxu0 0
        %1325 = vmatprep.subr.bf16.mxu0 0
        %1326 = vmatpush1.bf16.msra.mxu0 0
        %1327 = vmatprep.subr.bf16.mxu0 0
        %1328 = vmatpush1.bf16.msra.mxu0 0
        %1329 = vmatprep.subr.bf16.mxu0 0
        %1330 = vmatpush1.bf16.msra.mxu0 0
        %1331 = vmatprep.subr.bf16.mxu0 0
        %1332 = vmatpush1.bf16.msra.mxu0 0
        %1333 = vmatprep.subr.bf16.mxu0 0
        %1334 = vmatpush1.bf16.msra.mxu0 0
        %1335 = vmatprep.subr.bf16.mxu0 0
        %1336 = vmatpush1.bf16.msra.mxu0 0
        %1337 = vmatprep.subr.bf16.mxu0 0
        %1338 = vmatpush1.bf16.msra.mxu0 0
        %1339 = vmatprep.subr.bf16.mxu0 0
        %1340 = vmatpush1.bf16.msra.mxu0 0
        %1341 = vmatprep.subr.bf16.mxu0 0
        %1342 = vmatpush1.bf16.msra.mxu0 0
        %1343 = vmatprep.subr.bf16.mxu0 0
        %1344 = vmatpush1.bf16.msra.mxu0 0
        %1345 = vmatprep.subr.bf16.mxu0 0
        %1346 = vmatpush1.bf16.msra.mxu0 0
        %1347 = vmatprep.mubr.bf16.mxu0 0
        %1348 = vmatmul.mubr.bf16.gmra.mrb[0].mxu0 %v1310
        %v1349 = vpop.f32.mrb[0].mxu0
        %v1350 = vadd.f32 0.0, %v1349
        %v1351 = vpop.f32.mrb[0].mxu0
        %v1352 = vpop.f32.mrb[0].mxu0
        %v1353 = vpop.f32.mrb[0].mxu0
        %1354 = vdwg.mxu0
        %1355 = vrot.lane.b32.xlu0 %v1009, 32
        %v1356 = vpop.permute.xlu0 %1355
        %1357 = vrot.lane.b32.xlu0 %v1018, 32
        %v1358 = vpop.permute.xlu0 %1357
        %v1360 = vsel %vm1020, %v1356, 0
        %v1363 = vsel %vm1020, %v1358, 0
        %1365 = vmatprep.subr.bf16.mxu0 0
        %1366 = vmatpush1.bf16.xpose.msra.mxu0 %v1363
        %1367 = vmatprep.subr.bf16.mxu0 0
        %1368 = vmatpush1.bf16.xpose.msra.mxu0 0
        %1369 = vmatprep.subr.bf16.mxu0 0
        %1370 = vmatpush1.bf16.xpose.msra.mxu0 0
        %1371 = vmatprep.subr.bf16.mxu0 0
        %1372 = vmatpush1.bf16.xpose.msra.mxu0 0
        %1373 = vmatprep.subr.bf16.mxu0 0
        %1374 = vmatpush1.bf16.xpose.msra.mxu0 0
        %1375 = vmatprep.subr.bf16.mxu0 0
        %1376 = vmatpush1.bf16.xpose.msra.mxu0 0
        %1377 = vmatprep.subr.bf16.mxu0 0
        %1378 = vmatpush1.bf16.xpose.msra.mxu0 0
        %1379 = vmatprep.subr.bf16.mxu0 0
        %1380 = vmatpush1.bf16.xpose.msra.mxu0 0
        %1381 = vmatprep.subr.bf16.mxu0 0
        %1382 = vmatpush1.bf16.xpose.msra.mxu0 0
        %1383 = vmatprep.subr.bf16.mxu0 0
        %1384 = vmatpush1.bf16.xpose.msra.mxu0 0
        %1385 = vmatprep.subr.bf16.mxu0 0
        %1386 = vmatpush1.bf16.xpose.msra.mxu0 0
        %1387 = vmatprep.subr.bf16.mxu0 0
        %1388 = vmatpush1.bf16.xpose.msra.mxu0 0
        %1389 = vmatprep.subr.bf16.mxu0 0
        %1390 = vmatpush1.bf16.xpose.msra.mxu0 0
        %1391 = vmatprep.subr.bf16.mxu0 0
        %1392 = vmatpush1.bf16.xpose.msra.mxu0 0
        %1393 = vmatprep.subr.bf16.mxu0 0
        %1394 = vmatpush1.bf16.xpose.msra.mxu0 0
        %1395 = vmatprep.subr.bf16.mxu0 0
        %1396 = vmatpush1.bf16.xpose.msra.mxu0 0
        %1397 = vmatprep.mubr.bf16.mxu0 0
        %1398 = vmatmul.mubr.bf16.gmra.mrb[0].mxu0 %v1360
        %v1399 = vpop.f32.mrb[0].mxu0
        %v1400 = vadd.f32 0.0, %v1399
        %v1401 = vpop.f32.mrb[0].mxu0
        %v1402 = vpop.f32.mrb[0].mxu0
        %v1403 = vpop.f32.mrb[0].mxu0
        %1404 = vdwg.mxu0
        %v1405 = vsel %vm1067, %v1400, -inf
        %1406 = vmax.xlane.f32.xlu0 %v1405
        %v1407 = vpop.xlane.xlu0 %1406
        %v1408 = vsub.f32 %v1400, %v1407
        %v1409 = vmul.f32 %v1408, 1.442695
        %v1410 = vpow.pop %v1409
        %v1411 = vsel %vm1067, %v1410, 0.0
        %1412 = vadd.xlane.f32.xlu0 %v1411
        %v1413 = vpop.xlane.xlu0 %1412
        %v1414 = vrcp.pop %v1413
        %v1415 = vmul.f32 %v1410, %v1414
        %s1416 = scalar_lea.vmem %s618, 24 [#allocation14]
        %1417 = vst.msk [vmem:[%s1416] sm:$0xff] %vm1067, %v1415
        %v1418 = vpack.c.bf16 %v1415, %v1415
        %1419 = vrot.lane.b32.xlu0 %v1019, 32
        %v1420 = vpop.permute.xlu0 %1419
        %v1422 = vsel %vm1067, %v1418, 0
        %v1425 = vsel %vm1084, %v1420, 0
        %1427 = vmatprep.subr.bf16.mxu0 0
        %1428 = vmatpush1.bf16.msra.mxu0 %v1425
        %1429 = vmatprep.subr.bf16.mxu0 0
        %1430 = vmatpush1.bf16.msra.mxu0 0
        %1431 = vmatprep.subr.bf16.mxu0 0
        %1432 = vmatpush1.bf16.msra.mxu0 0
        %1433 = vmatprep.subr.bf16.mxu0 0
        %1434 = vmatpush1.bf16.msra.mxu0 0
        %1435 = vmatprep.subr.bf16.mxu0 0
        %1436 = vmatpush1.bf16.msra.mxu0 0
        %1437 = vmatprep.subr.bf16.mxu0 0
        %1438 = vmatpush1.bf16.msra.mxu0 0
        %1439 = vmatprep.subr.bf16.mxu0 0
        %1440 = vmatpush1.bf16.msra.mxu0 0
        %1441 = vmatprep.subr.bf16.mxu0 0
        %1442 = vmatpush1.bf16.msra.mxu0 0
        %1443 = vmatprep.subr.bf16.mxu0 0
        %1444 = vmatpush1.bf16.msra.mxu0 0
        %1445 = vmatprep.subr.bf16.mxu0 0
        %1446 = vmatpush1.bf16.msra.mxu0 0
        %1447 = vmatprep.subr.bf16.mxu0 0
        %1448 = vmatpush1.bf16.msra.mxu0 0
        %1449 = vmatprep.subr.bf16.mxu0 0
        %1450 = vmatpush1.bf16.msra.mxu0 0
        %1451 = vmatprep.subr.bf16.mxu0 0
        %1452 = vmatpush1.bf16.msra.mxu0 0
        %1453 = vmatprep.subr.bf16.mxu0 0
        %1454 = vmatpush1.bf16.msra.mxu0 0
        %1455 = vmatprep.subr.bf16.mxu0 0
        %1456 = vmatpush1.bf16.msra.mxu0 0
        %1457 = vmatprep.subr.bf16.mxu0 0
        %1458 = vmatpush1.bf16.msra.mxu0 0
        %1459 = vmatprep.mubr.bf16.mxu0 0
        %1460 = vmatmul.mubr.bf16.gmra.mrb[0].mxu0 %v1422
        %v1461 = vpop.f32.mrb[0].mxu0
        %v1462 = vadd.f32 0.0, %v1461
        %v1463 = vpop.f32.mrb[0].mxu0
        %v1464 = vpop.f32.mrb[0].mxu0
        %v1465 = vpop.f32.mrb[0].mxu0
        %1466 = vdwg.mxu0
        %1468 = vrot.lane.b32.xlu0 %v1238, 32
        %v1469 = vpop.permute.xlu0 %1468
        %1472 = vrot.lane.b32.xlu0 %v1350, 64
        %v1473 = vpop.permute.xlu0 %1472
        %1476 = vrot.lane.b32.xlu0 %v1462, 96
        %v1477 = vpop.permute.xlu0 %1476
        %v1479 = vsel %vm1020, %v1123, %v1469
        %vm1480 = vcmask 523264
        %v1481 = vsel %vm1480, %v1479, %v1473
        %vm1482 = vcmask 785408
        %v1483 = vsel %vm1482, %v1481, %v1477
        %v1484 = vpack.c.bf16 %v1483, %v1483
        %v1485 = vld [vmem:[#allocation11] sm:$0xf]
        %v1486 = vld [vmem:[#allocation11 + $0x4] sm:$0xf]
        %v1487 = vld [vmem:[#allocation11 + $0x8] sm:$0xf]
        %v1488 = vld [vmem:[#allocation11 + $0xc] sm:$0xf]
        %v1489 = vld [vmem:[#allocation11 + $0x10] sm:$0xf]
        %v1490 = vld [vmem:[#allocation11 + $0x14] sm:$0xf]
        %v1491 = vld [vmem:[#allocation11 + $0x18] sm:$0xf]
        %v1492 = vld [vmem:[#allocation11 + $0x1c] sm:$0xf]
        %v1493 = vld [vmem:[#allocation11 + $0x20] sm:$0xf]
        %v1494 = vld [vmem:[#allocation11 + $0x24] sm:$0xf]
        %v1495 = vld [vmem:[#allocation11 + $0x28] sm:$0xf]
        %v1496 = vld [vmem:[#allocation11 + $0x2c] sm:$0xf]
        %v1497 = vld [vmem:[#allocation11 + $0x30] sm:$0xf]
        %v1498 = vld [vmem:[#allocation11 + $0x34] sm:$0xf]
        %v1499 = vld [vmem:[#allocation11 + $0x38] sm:$0xf]
        %v1500 = vld [vmem:[#allocation11 + $0x3c] sm:$0xf]
        %v1501 = vld [vmem:[%s12] sm:$0x1]
        %v1503 = vlaneseq
        %v1504 = vshrl.u32 %v1503, 7
        %v1505 = vsub.s32 0, %v1504
        %v1506 = vrot.slane %v1501, %v1505
        %v1524 = vunpack.c.l.b16 %v1485
        %v1525 = vunpack.c.l.b16 %v1486
        %v1526 = vunpack.c.l.b16 %v1487
        %v1527 = vunpack.c.l.b16 %v1488
        %v1528 = vunpack.c.l.b16 %v1489
        %v1529 = vunpack.c.l.b16 %v1490
        %v1530 = vunpack.c.l.b16 %v1491
        %v1531 = vunpack.c.l.b16 %v1492
        %v1532 = vunpack.c.l.b16 %v1493
        %v1533 = vunpack.c.l.b16 %v1494
        %v1534 = vunpack.c.l.b16 %v1495
        %v1535 = vunpack.c.l.b16 %v1496
        %v1536 = vunpack.c.l.b16 %v1497
        %v1537 = vunpack.c.l.b16 %v1498
        %v1538 = vunpack.c.l.b16 %v1499
        %v1539 = vunpack.c.l.b16 %v1500
        %v1540 = vpack.c.b16 %v1525, %v1524
        %v1541 = vpack.c.b16 %v1527, %v1526
        %v1542 = vpack.c.b16 %v1529, %v1528
        %v1543 = vpack.c.b16 %v1531, %v1530
        %v1544 = vpack.c.b16 %v1533, %v1532
        %v1545 = vpack.c.b16 %v1535, %v1534
        %v1546 = vpack.c.b16 %v1537, %v1536
        %v1547 = vpack.c.b16 %v1539, %v1538
        %1556 = vmatprep.subr.bf16.mxu0 0
        %1557 = vmatpush1.bf16.msra.mxu0 %v1540
        %1558 = vmatprep.subr.bf16.mxu0 0
        %1559 = vmatpush1.bf16.msra.mxu0 %v1541
        %1560 = vmatprep.subr.bf16.mxu0 0
        %1561 = vmatpush1.bf16.msra.mxu0 %v1542
        %1562 = vmatprep.subr.bf16.mxu0 0
        %1563 = vmatpush1.bf16.msra.mxu0 %v1543
        %1564 = vmatprep.subr.bf16.mxu0 0
        %1565 = vmatpush1.bf16.msra.mxu0 %v1544
        %1566 = vmatprep.subr.bf16.mxu0 0
        %1567 = vmatpush1.bf16.msra.mxu0 %v1545
        %1568 = vmatprep.subr.bf16.mxu0 0
        %1569 = vmatpush1.bf16.msra.mxu0 %v1546
        %1570 = vmatprep.subr.bf16.mxu0 0
        %1571 = vmatpush1.bf16.msra.mxu0 %v1547
        %1572 = vmatprep.subr.bf16.mxu0 0
        %1573 = vmatpush1.bf16.msra.mxu0 0
        %1574 = vmatprep.subr.bf16.mxu0 0
        %1575 = vmatpush1.bf16.msra.mxu0 0
        %1576 = vmatprep.subr.bf16.mxu0 0
        %1577 = vmatpush1.bf16.msra.mxu0 0
        %1578 = vmatprep.subr.bf16.mxu0 0
        %1579 = vmatpush1.bf16.msra.mxu0 0
        %1580 = vmatprep.subr.bf16.mxu0 0
        %1581 = vmatpush1.bf16.msra.mxu0 0
        %1582 = vmatprep.subr.bf16.mxu0 0
        %1583 = vmatpush1.bf16.msra.mxu0 0
        %1584 = vmatprep.subr.bf16.mxu0 0
        %1585 = vmatpush1.bf16.msra.mxu0 0
        %1586 = vmatprep.subr.bf16.mxu0 0
        %1587 = vmatpush1.bf16.msra.mxu0 0
        %1588 = vmatprep.mubr.bf16.mxu0 0
        %1589 = vmatmul.mubr.bf16.gmra.mrb[0].mxu0 %v1484
        %v1590 = vpop.f32.mrb[0].mxu0
        %v1591 = vadd.f32 %v1506, %v1590
        %v1592 = vpop.f32.mrb[0].mxu0
        %v1593 = vpop.f32.mrb[0].mxu0
        %v1594 = vpop.f32.mrb[0].mxu0
        %1595 = vdwg.mxu0
        %v1596 = vadd.f32 %v620, %v1591
        %v1597 = vld [vmem:[%s13] sm:$0x1]
        %v1598 = vld [vmem:[%s14] sm:$0x1]
        %1599 = vadd.xlane.f32.xlu0 %v1596
        %v1600 = vpop.xlane.xlu0 %1599
        %v1601 = vmul.f32 %v1600, %v625
        %v1602 = vsub.f32 %v1596, %v1601
        %v1603 = vmul.f32 %v1602, %v1602
        %1604 = vadd.xlane.f32.xlu0 %v1603
        %v1605 = vpop.xlane.xlu0 %1604
        %v1606 = vmul.f32 %v1605, %v625
        %v1607 = vadd.f32 %v1606, 1e-05
        %v1608 = vrsqrt.pop %v1607
        %v1609 = vmul.f32 %v1602, %v1608
        %v1611 = vlaneseq
        %v1612 = vshrl.u32 %v1611, 7
        %v1613 = vsub.s32 0, %v1612
        %v1614 = vrot.slane %v1597, %v1613
        %v1616 = vmul.f32 %v1609, %v1614
        %v1618 = vlaneseq
        %v1619 = vshrl.u32 %v1618, 7
        %v1620 = vsub.s32 0, %v1619
        %v1621 = vrot.slane %v1598, %v1620
        %v1623 = vadd.f32 %v1616, %v1621
        %1624 = vst [vmem:[%s611] sm:$0xff] %v1623
        %s1625 = sand.u32 %s368, 1
        %s1626 = scalar_lea.sflag [#allocation4], %s1625
        %s1627 = sand.u32 %s368, 1
        %s1628 = smul.addr %s1627, 8
        %s1629 = scalar_lea.vmem [#allocation13], %s1628
        %s1630 = sand.u32 %s394, 1
        %s1631 = scalar_lea.sflag [#allocation15], %s1630
        %s1632 = sand.u32 %s394, 1
        %s1633 = smul.addr %s1632, 32
        %s1634 = scalar_lea.vmem [#allocation14], %s1633
        // Predicated region
        $region105: #{tpu_custom_call.1} parent=79 // pred_check
          %p1635 = pneg %p378
        $region106: #{tpu_custom_call.1} parent=79 // pred_check_branch
          %1637 = sbr.rel (%p1635) target = $region108
        $region107: #{tpu_custom_call.1} parent=79 // pred_region
          %s1639 = ssub.s32 128, 128
          %1640 = vsyncadd %s1626, %s1639
          %s1641 = smul.addr %s40, 128
          %s1642 = scalar_lea.hbm %s15, %s1641
          %s1644 = sshll.u32 %s1629, 4
          %s1645 = int_to_ptr.vmem [resolvable:$true] %s1644
          %1647 = dma.vmem_to_hbm [thread:$0]  %s1645, 128, %s1642, %s1626
        $region108: #{tpu_custom_call.1} parent=79 // pred_fallthru
          _
        // Predicated region
        $region109: #{tpu_custom_call.1} parent=79 // pred_check
          %p1648 = pneg %p404
        $region110: #{tpu_custom_call.1} parent=79 // pred_check_branch
          %1650 = sbr.rel (%p1648) target = $region112
        $region111: #{tpu_custom_call.1} parent=79 // pred_region
          %s1652 = ssub.s32 512, 512
          %1653 = vsyncadd %s1631, %s1652
          %s1654 = smul.addr %s40, 4
          %s1655 = smul.addr %s1654, 128
          %s1656 = scalar_lea.hbm %s16, %s1655
          %s1657 = sshll.u32 %s1634, 4
          %s1658 = int_to_ptr.vmem [resolvable:$true] %s1657
          %1663 = dma.vmem_to_hbm [thread:$0]  %s1658, 512, %s1656, %s1631, 128, 128, 8
        $region112: #{tpu_custom_call.1} parent=79 // pred_fallthru
          _
      $region80: #{tpu_custom_call.1} parent=5 // pred_fallthru
        _
      %p1664 = scmp.le.s32.totalorder 2, %s35
      // Predicated region
      $region113: #{tpu_custom_call.1} parent=5 // pred_check
        %p1665 = pneg %p1664
      $region114: #{tpu_custom_call.1} parent=5 // pred_check_branch
        %1667 = sbr.rel (%p1665) target = $region116
      $region115: #{tpu_custom_call.1} parent=5 // pred_region
        %s1668 = ssub.s32 %s35, 2
        // Predicated region
        $region117: #{tpu_custom_call.1} parent=115 // pred_check
          %p1669 = pneg %p384
        $region118: #{tpu_custom_call.1} parent=115 // pred_check_branch
          %1671 = sbr.rel (%p1669) target = $region120
        $region119: #{tpu_custom_call.1} parent=115 // pred_region
          %s1672 = sand.u32 %s369, 1
          %s1673 = scalar_lea.sflag [#allocation4], %s1672
          %s1674 = sand.u32 %s369, 1
          %s1675 = smul.addr %s1674, 8
          %s1676 = scalar_lea.vmem [#allocation13], %s1675
          %1677 = dma.done %s1673, 128
        $region120: #{tpu_custom_call.1} parent=115 // pred_fallthru
          _
        // Predicated region
        $region121: #{tpu_custom_call.1} parent=115 // pred_check
          %p1678 = pneg %p410
        $region122: #{tpu_custom_call.1} parent=115 // pred_check_branch
          %1680 = sbr.rel (%p1678) target = $region124
        $region123: #{tpu_custom_call.1} parent=115 // pred_region
          %s1681 = sand.u32 %s395, 1
          %s1682 = scalar_lea.sflag [#allocation15], %s1681
          %s1683 = sand.u32 %s395, 1
          %s1684 = smul.addr %s1683, 32
          %s1685 = scalar_lea.vmem [#allocation14], %s1684
          %1686 = dma.done %s1682, 512
        $region124: #{tpu_custom_call.1} parent=115 // pred_fallthru
          _
      $region116: #{tpu_custom_call.1} parent=5 // pred_fallthru
        _
    $region6: #{tpu_custom_call.1} parent=1 // loop_footer
      %s39 = sadd.s32 1, %s35
    $region7: #{tpu_custom_call.1} parent=1 // loop_footer_branch
      %34 = sbr.rel target = $region3
    $region8: #{tpu_custom_call.1} parent=1 // loop_exit
      _
    %1687 = vsyncpa [#allocation3], 1
    %s1688 = scalar_lea.sflag [#allocation3], 1
    %1689 = vsyncpa %s1688, 1
    %1690 = vsyncpa [#allocation6], 1
    %1691 = vsyncpa [#allocation9], 1
    %1692 = vsyncpa [#allocation12], 1
    %1693 = vsyncpa [#allocation4], 1
    %s1694 = scalar_lea.sflag [#allocation4], 1
    %1695 = vsyncpa %s1694, 1
    %1696 = vsyncpa [#allocation15], 1
    %s1697 = scalar_lea.sflag [#allocation15], 1
    %1698 = vsyncpa %s1697, 1

</llo_original>
